<compile_context>
chip_gen: v7x
topology: tpu7x:2x2x1
jax: 0.10.0
libtpu: 0.0.40
codegen_flags: <defaults>
</compile_context>

<pallas_src>
import functools
import math

import jax
import jax.numpy as jnp
from jax.experimental import pallas as pl
from jax.experimental.pallas import tpu as pltpu


def _mha_kernel(q_ref, k_ref, v_ref, mask_ref, wq_ref, wk_ref, wv_ref, out_ref,
                *, num_heads, head_size):
    bt, sq, d_in = q_ref.shape
    sk = k_ref.shape[1]

    # --- projections: one big matmul each (fills MXU rows: M = bt*S) ---
    q = jnp.dot(q_ref[...].reshape(bt * sq, d_in), wq_ref[...],
                preferred_element_type=jnp.float32)          # (bt*sq, H*Dh)
    k = jnp.dot(k_ref[...].reshape(bt * sk, d_in), wk_ref[...],
                preferred_element_type=jnp.float32)          # (bt*sk, H*Dh)
    v = jnp.dot(v_ref[...].reshape(bt * sk, d_in), wv_ref[...],
                preferred_element_type=jnp.float32)          # (bt*sk, H*Dh)

    scale = 1.0 / math.sqrt(head_size)
    mask = mask_ref[...].astype(jnp.float32)                 # (bt, 1, sk) additive

    head_outs = []
    for h in range(num_heads):                               # static unroll, H is small
        lo = h * head_size
        qh = q[:, lo:lo + head_size].reshape(bt, sq, head_size)
        kh = k[:, lo:lo + head_size].reshape(bt, sk, head_size)
        vh = v[:, lo:lo + head_size].reshape(bt, sk, head_size)

        logits = jnp.einsum("bqd,bkd->bqk", qh, kh,
                            preferred_element_type=jnp.float32) * scale
        logits = logits + mask                               # broadcast over query dim

        # softmax over the key axis (PyTorch dim=3)
        m = jnp.max(logits, axis=-1, keepdims=True)
        p = jnp.exp(logits - m)
        denom = jnp.sum(p, axis=-1, keepdims=True)
        r = pl.reciprocal(denom, approx=True)                # EUP slot, ~free
        r = r * (2.0 - denom * r)                            # one Newton step -> f32 accuracy
        w = p * r

        head_outs.append(jnp.einsum("bqk,bkd->bqd", w, vh,
                                    preferred_element_type=jnp.float32))

    # Merge heads -> (bt, sq, H*Dh); single lane-dense store.
    out = jnp.concatenate(head_outs, axis=-1)
    out_ref[...] = out.astype(out_ref.dtype)


def multi_head_attention(key, key_mask, query, value, wq, wk, wv, *,
                         num_heads, head_size, block_b=None):
    """key/query/value: (B, S, Din); wq/wk/wv: transposed nn.Linear weights (Din, H*Dh);
    key_mask: None or additive mask over key positions, shape (B, Sk) (== the
    (B, 1, 1, Sk) mask of the PyTorch module). Returns (B, Sq, H*Dh)."""
    b, sq, d_in = query.shape
    _, sk, _ = key.shape
    hd = num_heads * head_size
    assert key.shape == (b, sk, d_in) and value.shape == (b, sk, d_in)
    assert wq.shape == (d_in, hd) and wk.shape == (d_in, hd) and wv.shape == (d_in, hd)

    if key_mask is None:
        mask = jnp.zeros((b, 1, sk), dtype=jnp.float32)
    else:
        mask = jnp.asarray(key_mask, dtype=jnp.float32).reshape(b, 1, sk)

    # Batch tile: amortize the ~0.35us/grid-step overhead and give the MXU
    # hundreds of rows per projection matmul.
    if block_b is None:
        target_rows = 512
        block_b = max(1, min(b, target_rows // max(sq, 1)))
        while b % block_b != 0:
            block_b -= 1
    grid = (b // block_b,)

    # Explicit VMEM budget: double-buffered activations/outputs + resident weights.
    itemsize = jnp.dtype(query.dtype).itemsize
    per_step = (block_b * sq * d_in + 2 * block_b * sk * d_in
                + block_b * sk + block_b * sq * hd) * itemsize
    weight_bytes = 3 * d_in * hd * itemsize
    vmem_bytes = int(2 * per_step + 2 * weight_bytes) + (8 << 20)
    vmem_bytes = min(max(vmem_bytes, 32 << 20), 64 << 20)   # 64 MiB cap: safe on v7x

    kernel = functools.partial(_mha_kernel, num_heads=num_heads, head_size=head_size)

    return pl.pallas_call(
        kernel,
        out_shape=jax.ShapeDtypeStruct((b, sq, hd), query.dtype),
        grid_spec=pltpu.PrefetchScalarGridSpec(
            num_scalar_prefetch=0,
            grid=grid,
            in_specs=[
                pl.BlockSpec((block_b, sq, d_in), lambda i: (i, 0, 0)),  # query
                pl.BlockSpec((block_b, sk, d_in), lambda i: (i, 0, 0)),  # key
                pl.BlockSpec((block_b, sk, d_in), lambda i: (i, 0, 0)),  # value
                pl.BlockSpec((block_b, 1, sk), lambda i: (i, 0, 0)),     # additive key mask
                pl.BlockSpec((d_in, hd), lambda i: (0, 0)),              # Wq^T (stationary)
                pl.BlockSpec((d_in, hd), lambda i: (0, 0)),              # Wk^T
                pl.BlockSpec((d_in, hd), lambda i: (0, 0)),              # Wv^T
            ],
            out_specs=pl.BlockSpec((block_b, sq, hd), lambda i: (i, 0, 0)),
        ),
        compiler_params=pltpu.CompilerParams(
            dimension_semantics=("parallel",),   # batch tiles shard across TCs on v7x
            vmem_limit_bytes=vmem_bytes,
        ),
    )(query, key, value, mask, wq, wk, wv)


def multi_head_attention_ref(key, key_mask, query, value, wq, wk, wv, *,
                             num_heads, head_size):
    b, sq, d_in = query.shape
    sk = key.shape[1]
    hd = num_heads * head_size
    q = (query @ wq).reshape(b, sq, num_heads, head_size).transpose(0, 2, 1, 3)
    k = (key @ wk).reshape(b, sk, num_heads, head_size).transpose(0, 2, 1, 3)
    v = (value @ wv).reshape(b, sk, num_heads, head_size).transpose(0, 2, 1, 3)
    logits = jnp.einsum("bhqd,bhkd->bhqk", q, k) / math.sqrt(head_size)
    if key_mask is not None:
        logits = logits + jnp.asarray(key_mask, jnp.float32).reshape(b, 1, 1, sk)
    w = jax.nn.softmax(logits, axis=-1)
    out = jnp.einsum("bhqk,bhkd->bhqd", w, v)
    return out.transpose(0, 2, 1, 3).reshape(b, sq, hd)


if __name__ == "__main__":
    # Small shapes consistent with the module: batch=4, seq=8, inputsize=32,
    # num_heads=2, head_size=16 (output_dim = 32).
    B, S, D_IN = 4, 8, 32
    NUM_HEADS, HEAD_SIZE = 2, 16
    HD = NUM_HEADS * HEAD_SIZE

    root = jax.random.PRNGKey(0)
    kk, kq, kv, k1, k2, k3 = jax.random.split(root, 6)

    key_x = jax.random.normal(kk, (B, S, D_IN), dtype=jnp.float32)
    query_x = jax.random.normal(kq, (B, S, D_IN), dtype=jnp.float32)
    value_x = jax.random.normal(kv, (B, S, D_IN), dtype=jnp.float32)

    # nn.Linear(inputsize, num_heads*head_size, bias=False) weights, stored
    # transposed as (Din, H*Dh) so the kernel computes x @ W^T.
    wq = jax.random.normal(k1, (D_IN, HD), dtype=jnp.float32) / jnp.sqrt(D_IN)
    wk = jax.random.normal(k2, (D_IN, HD), dtype=jnp.float32) / jnp.sqrt(D_IN)
    wv = jax.random.normal(k3, (D_IN, HD), dtype=jnp.float32) / jnp.sqrt(D_IN)

    # Additive key padding mask (0 for valid, -1e9 for padded key positions),
    # equivalent to the (B, 1, 1, S) key_mask broadcast in the PyTorch module.
    lengths = jnp.array([8, 6, 7, 5], dtype=jnp.int32)
    pos = jnp.arange(S)[None, :]
    key_mask = jnp.where(pos < lengths[:, None], 0.0, -1e9).astype(jnp.float32)  # (B, S)

    out = multi_head_attention(key_x, key_mask, query_x, value_x, wq, wk, wv,
                               num_heads=NUM_HEADS, head_size=HEAD_SIZE)
    out = jax.block_until_ready(out)

    ref = multi_head_attention_ref(key_x, key_mask, query_x, value_x, wq, wk, wv,
                                   num_heads=NUM_HEADS, head_size=HEAD_SIZE)
    assert out.shape == (B, S, HD)
    max_err = float(jnp.max(jnp.abs(out - ref)))
    assert jnp.allclose(out, ref, atol=1e-4, rtol=1e-4), f"mismatch vs reference (max abs err {max_err})"

    print("KERNEL_OK")
</pallas_src>

<mosaic_0001>
module attributes {stable_mosaic.version = 11 : i64} {
  func.func @_mha_kernel(%arg0: i32, %arg1: memref<4x8x32xf32, #tpu.memory_space<vmem>>, %arg2: memref<4x8x32xf32, #tpu.memory_space<vmem>>, %arg3: memref<4x8x32xf32, #tpu.memory_space<vmem>>, %arg4: memref<4x1x8xf32, #tpu.memory_space<vmem>>, %arg5: memref<32x32xf32, #tpu.memory_space<vmem>>, %arg6: memref<32x32xf32, #tpu.memory_space<vmem>>, %arg7: memref<32x32xf32, #tpu.memory_space<vmem>>, %arg8: memref<4x8x32xf32, #tpu.memory_space<vmem>>) attributes {dimension_semantics = [#tpu.dimension_semantics<parallel>], iteration_bounds = array<i64: 1>, scalar_prefetch = 0 : i64, scratch_operands = 0 : i64, tpu.core_type = #tpu.core_type<tc>, window_params = [{transform_indices = @transform_0, window_bounds = array<i64: 4, 8, 32>}, {transform_indices = @transform_1, window_bounds = array<i64: 4, 8, 32>}, {transform_indices = @transform_2, window_bounds = array<i64: 4, 8, 32>}, {transform_indices = @transform_3, window_bounds = array<i64: 4, 1, 8>}, {pipeline_mode = #tpu.pipeline_mode<synchronous>, transform_indices = @transform_4, window_bounds = array<i64: 32, 32>}, {pipeline_mode = #tpu.pipeline_mode<synchronous>, transform_indices = @transform_5, window_bounds = array<i64: 32, 32>}, {pipeline_mode = #tpu.pipeline_mode<synchronous>, transform_indices = @transform_6, window_bounds = array<i64: 32, 32>}, {transform_indices = @transform_7, window_bounds = array<i64: 4, 8, 32>}]} {
    %c0 = arith.constant 0 : index
    %c0_0 = arith.constant 0 : index
    %c0_1 = arith.constant 0 : index
    %0 = vector.load %arg1[%c0, %c0_0, %c0_1] : memref<4x8x32xf32, #tpu.memory_space<vmem>>, vector<4x8x32xf32>
    %1 = vector.shape_cast %0 : vector<4x8x32xf32> to vector<32x32xf32>
    %c0_2 = arith.constant 0 : index
    %c0_3 = arith.constant 0 : index
    %2 = vector.load %arg5[%c0_2, %c0_3] : memref<32x32xf32, #tpu.memory_space<vmem>>, vector<32x32xf32>
    %cst = arith.constant dense<0.000000e+00> : vector<32x32xf32>
    %3 = tpu.matmul %1, %2, %cst {dimension_numbers = #tpu.dot_dimension_numbers<[1], [0], [0], [1], [0, 0, 1, 1], [], []>} : vector<32x32xf32>, vector<32x32xf32>, vector<32x32xf32> -> vector<32x32xf32>
    %c0_4 = arith.constant 0 : index
    %c0_5 = arith.constant 0 : index
    %c0_6 = arith.constant 0 : index
    %4 = vector.load %arg2[%c0_4, %c0_5, %c0_6] : memref<4x8x32xf32, #tpu.memory_space<vmem>>, vector<4x8x32xf32>
    %5 = vector.shape_cast %4 : vector<4x8x32xf32> to vector<32x32xf32>
    %c0_7 = arith.constant 0 : index
    %c0_8 = arith.constant 0 : index
    %6 = vector.load %arg6[%c0_7, %c0_8] : memref<32x32xf32, #tpu.memory_space<vmem>>, vector<32x32xf32>
    %cst_9 = arith.constant dense<0.000000e+00> : vector<32x32xf32>
    %7 = tpu.matmul %5, %6, %cst_9 {dimension_numbers = #tpu.dot_dimension_numbers<[1], [0], [0], [1], [0, 0, 1, 1], [], []>} : vector<32x32xf32>, vector<32x32xf32>, vector<32x32xf32> -> vector<32x32xf32>
    %c0_10 = arith.constant 0 : index
    %c0_11 = arith.constant 0 : index
    %c0_12 = arith.constant 0 : index
    %8 = vector.load %arg3[%c0_10, %c0_11, %c0_12] : memref<4x8x32xf32, #tpu.memory_space<vmem>>, vector<4x8x32xf32>
    %9 = vector.shape_cast %8 : vector<4x8x32xf32> to vector<32x32xf32>
    %c0_13 = arith.constant 0 : index
    %c0_14 = arith.constant 0 : index
    %10 = vector.load %arg7[%c0_13, %c0_14] : memref<32x32xf32, #tpu.memory_space<vmem>>, vector<32x32xf32>
    %cst_15 = arith.constant dense<0.000000e+00> : vector<32x32xf32>
    %11 = tpu.matmul %9, %10, %cst_15 {dimension_numbers = #tpu.dot_dimension_numbers<[1], [0], [0], [1], [0, 0, 1, 1], [], []>} : vector<32x32xf32>, vector<32x32xf32>, vector<32x32xf32> -> vector<32x32xf32>
    %c0_16 = arith.constant 0 : index
    %c0_17 = arith.constant 0 : index
    %c0_18 = arith.constant 0 : index
    %12 = vector.load %arg4[%c0_16, %c0_17, %c0_18] : memref<4x1x8xf32, #tpu.memory_space<vmem>>, vector<4x1x8xf32>
    %13 = vector.extract_strided_slice %3 {offsets = [0, 0], sizes = [32, 16], strides = [1, 1]} : vector<32x32xf32> to vector<32x16xf32>
    %14 = vector.shape_cast %13 : vector<32x16xf32> to vector<4x8x16xf32>
    %15 = vector.extract_strided_slice %7 {offsets = [0, 0], sizes = [32, 16], strides = [1, 1]} : vector<32x32xf32> to vector<32x16xf32>
    %16 = vector.shape_cast %15 : vector<32x16xf32> to vector<4x8x16xf32>
    %17 = vector.extract_strided_slice %11 {offsets = [0, 0], sizes = [32, 16], strides = [1, 1]} : vector<32x32xf32> to vector<32x16xf32>
    %18 = vector.shape_cast %17 : vector<32x16xf32> to vector<4x8x16xf32>
    "tpu.trace_start"() <{level = 10 : i32, message = "bqd,bkd->bqk"}> : () -> ()
    %cst_19 = arith.constant dense<0.000000e+00> : vector<4x8x8xf32>
    %19 = tpu.matmul %14, %16, %cst_19 {dimension_numbers = #tpu.dot_dimension_numbers<[2], [2], [1], [1], [0, 0, 0, 1, 1, 1], [0], [0]>} : vector<4x8x16xf32>, vector<4x8x16xf32>, vector<4x8x8xf32> -> vector<4x8x8xf32>
    "tpu.trace_stop"() : () -> ()
    %cst_20 = arith.constant 2.500000e-01 : f32
    %20 = vector.broadcast %cst_20 : f32 to vector<4x8x8xf32>
    %21 = arith.mulf %19, %20 : vector<4x8x8xf32>
    %22 = vector.broadcast %12 : vector<4x1x8xf32> to vector<4x8x8xf32>
    %23 = arith.addf %21, %22 : vector<4x8x8xf32>
    %cst_21 = arith.constant dense<0xFF800000> : vector<4x8xf32>
    %24 = vector.multi_reduction <maximumf>, %23, %cst_21 [2] : vector<4x8x8xf32> to vector<4x8xf32>
    %25 = vector.shape_cast %24 : vector<4x8xf32> to vector<4x8x1xf32>
    %26 = vector.broadcast %25 : vector<4x8x1xf32> to vector<4x8x8xf32>
    %27 = arith.subf %23, %26 : vector<4x8x8xf32>
    %28 = math.exp %27 : vector<4x8x8xf32>
    %cst_22 = arith.constant dense<0.000000e+00> : vector<4x8xf32>
    %29 = vector.multi_reduction <add>, %28, %cst_22 [2] : vector<4x8x8xf32> to vector<4x8xf32>
    %30 = vector.shape_cast %29 : vector<4x8xf32> to vector<4x8x1xf32>
    %31 = tpu.reciprocal %30 {approx = true} : vector<4x8x1xf32> -> vector<4x8x1xf32>
    %32 = arith.mulf %30, %31 : vector<4x8x1xf32>
    %cst_23 = arith.constant 2.000000e+00 : f32
    %33 = vector.broadcast %cst_23 : f32 to vector<4x8x1xf32>
    %34 = arith.subf %33, %32 : vector<4x8x1xf32>
    %35 = arith.mulf %31, %34 : vector<4x8x1xf32>
    %36 = vector.broadcast %35 : vector<4x8x1xf32> to vector<4x8x8xf32>
    %37 = arith.mulf %28, %36 : vector<4x8x8xf32>
    "tpu.trace_start"() <{level = 10 : i32, message = "bqk,bkd->bqd"}> : () -> ()
    %cst_24 = arith.constant dense<0.000000e+00> : vector<4x8x16xf32>
    %38 = tpu.matmul %37, %18, %cst_24 {dimension_numbers = #tpu.dot_dimension_numbers<[2], [1], [1], [2], [0, 0, 0, 1, 1, 2], [0], [0]>} : vector<4x8x8xf32>, vector<4x8x16xf32>, vector<4x8x16xf32> -> vector<4x8x16xf32>
    "tpu.trace_stop"() : () -> ()
    %39 = vector.extract_strided_slice %3 {offsets = [0, 16], sizes = [32, 16], strides = [1, 1]} : vector<32x32xf32> to vector<32x16xf32>
    %40 = vector.shape_cast %39 : vector<32x16xf32> to vector<4x8x16xf32>
    %41 = vector.extract_strided_slice %7 {offsets = [0, 16], sizes = [32, 16], strides = [1, 1]} : vector<32x32xf32> to vector<32x16xf32>
    %42 = vector.shape_cast %41 : vector<32x16xf32> to vector<4x8x16xf32>
    %43 = vector.extract_strided_slice %11 {offsets = [0, 16], sizes = [32, 16], strides = [1, 1]} : vector<32x32xf32> to vector<32x16xf32>
    %44 = vector.shape_cast %43 : vector<32x16xf32> to vector<4x8x16xf32>
    "tpu.trace_start"() <{level = 10 : i32, message = "bqd,bkd->bqk"}> : () -> ()
    %cst_25 = arith.constant dense<0.000000e+00> : vector<4x8x8xf32>
    %45 = tpu.matmul %40, %42, %cst_25 {dimension_numbers = #tpu.dot_dimension_numbers<[2], [2], [1], [1], [0, 0, 0, 1, 1, 1], [0], [0]>} : vector<4x8x16xf32>, vector<4x8x16xf32>, vector<4x8x8xf32> -> vector<4x8x8xf32>
    "tpu.trace_stop"() : () -> ()
    %cst_26 = arith.constant 2.500000e-01 : f32
    %46 = vector.broadcast %cst_26 : f32 to vector<4x8x8xf32>
    %47 = arith.mulf %45, %46 : vector<4x8x8xf32>
    %48 = vector.broadcast %12 : vector<4x1x8xf32> to vector<4x8x8xf32>
    %49 = arith.addf %47, %48 : vector<4x8x8xf32>
    %cst_27 = arith.constant dense<0xFF800000> : vector<4x8xf32>
    %50 = vector.multi_reduction <maximumf>, %49, %cst_27 [2] : vector<4x8x8xf32> to vector<4x8xf32>
    %51 = vector.shape_cast %50 : vector<4x8xf32> to vector<4x8x1xf32>
    %52 = vector.broadcast %51 : vector<4x8x1xf32> to vector<4x8x8xf32>
    %53 = arith.subf %49, %52 : vector<4x8x8xf32>
    %54 = math.exp %53 : vector<4x8x8xf32>
    %cst_28 = arith.constant dense<0.000000e+00> : vector<4x8xf32>
    %55 = vector.multi_reduction <add>, %54, %cst_28 [2] : vector<4x8x8xf32> to vector<4x8xf32>
    %56 = vector.shape_cast %55 : vector<4x8xf32> to vector<4x8x1xf32>
    %57 = tpu.reciprocal %56 {approx = true} : vector<4x8x1xf32> -> vector<4x8x1xf32>
    %58 = arith.mulf %56, %57 : vector<4x8x1xf32>
    %cst_29 = arith.constant 2.000000e+00 : f32
    %59 = vector.broadcast %cst_29 : f32 to vector<4x8x1xf32>
    %60 = arith.subf %59, %58 : vector<4x8x1xf32>
    %61 = arith.mulf %57, %60 : vector<4x8x1xf32>
    %62 = vector.broadcast %61 : vector<4x8x1xf32> to vector<4x8x8xf32>
    %63 = arith.mulf %54, %62 : vector<4x8x8xf32>
    "tpu.trace_start"() <{level = 10 : i32, message = "bqk,bkd->bqd"}> : () -> ()
    %cst_30 = arith.constant dense<0.000000e+00> : vector<4x8x16xf32>
    %64 = tpu.matmul %63, %44, %cst_30 {dimension_numbers = #tpu.dot_dimension_numbers<[2], [1], [1], [2], [0, 0, 0, 1, 1, 2], [0], [0]>} : vector<4x8x8xf32>, vector<4x8x16xf32>, vector<4x8x16xf32> -> vector<4x8x16xf32>
    "tpu.trace_stop"() : () -> ()
    %65 = tpu.concatenate %38, %64 in 2 : vector<4x8x16xf32>, vector<4x8x16xf32> -> vector<4x8x32xf32>
    %c0_31 = arith.constant 0 : index
    %c0_32 = arith.constant 0 : index
    %c0_33 = arith.constant 0 : index
    %66 = vector.load %arg8[%c0_31, %c0_32, %c0_33] : memref<4x8x32xf32, #tpu.memory_space<vmem>>, vector<4x8x32xf32>
    tpu.vector_store %arg8[%c0_31, %c0_32, %c0_33], %65 {strides = array<i32>} : memref<4x8x32xf32, #tpu.memory_space<vmem>>, vector<4x8x32xf32>,
    return
  }
  func.func @transform_0(%arg0: i32) -> (i32, i32, i32) {
    %c0_i32 = arith.constant 0 : i32
    %c0_i32_0 = arith.constant 0 : i32
    %c0_i32_1 = arith.constant 0 : i32
    return %arg0, %c0_i32, %c0_i32_0 : i32, i32, i32
  }
  func.func @transform_1(%arg0: i32) -> (i32, i32, i32) {
    %c0_i32 = arith.constant 0 : i32
    %c0_i32_0 = arith.constant 0 : i32
    %c0_i32_1 = arith.constant 0 : i32
    return %arg0, %c0_i32, %c0_i32_0 : i32, i32, i32
  }
  func.func @transform_2(%arg0: i32) -> (i32, i32, i32) {
    %c0_i32 = arith.constant 0 : i32
    %c0_i32_0 = arith.constant 0 : i32
    %c0_i32_1 = arith.constant 0 : i32
    return %arg0, %c0_i32, %c0_i32_0 : i32, i32, i32
  }
  func.func @transform_3(%arg0: i32) -> (i32, i32, i32) {
    %c0_i32 = arith.constant 0 : i32
    %c0_i32_0 = arith.constant 0 : i32
    %c0_i32_1 = arith.constant 0 : i32
    return %arg0, %c0_i32, %c0_i32_0 : i32, i32, i32
  }
  func.func @transform_4(%arg0: i32) -> (i32, i32) {
    %c0_i32 = arith.constant 0 : i32
    %c0_i32_0 = arith.constant 0 : i32
    %c0_i32_1 = arith.constant 0 : i32
    return %c0_i32, %c0_i32_0 : i32, i32
  }
  func.func @transform_5(%arg0: i32) -> (i32, i32) {
    %c0_i32 = arith.constant 0 : i32
    %c0_i32_0 = arith.constant 0 : i32
    %c0_i32_1 = arith.constant 0 : i32
    return %c0_i32, %c0_i32_0 : i32, i32
  }
  func.func @transform_6(%arg0: i32) -> (i32, i32) {
    %c0_i32 = arith.constant 0 : i32
    %c0_i32_0 = arith.constant 0 : i32
    %c0_i32_1 = arith.constant 0 : i32
    return %c0_i32, %c0_i32_0 : i32, i32
  }
  func.func @transform_7(%arg0: i32) -> (i32, i32, i32) {
    %c0_i32 = arith.constant 0 : i32
    %c0_i32_0 = arith.constant 0 : i32
    %c0_i32_1 = arith.constant 0 : i32
    return %arg0, %c0_i32, %c0_i32_0 : i32, i32, i32
  }
}

</mosaic_0001>

<llo_original>
// kernel: tpu_custom_call.1
$region0: #{tpu_custom_call.1}
  #allocation0 [shape = 'u32[]', space=smem, size = 0x4, offset = 0x4, fixed_abs, tag = 'smem constant byte address 0x4 - core index']
  #allocation1 [shape = 'u32[144,128]{1,0:T(1,128)}', space=vmem, size = 0x12000, scoped, tag = 'internal scratch']
  %s0 = inlined_call_operand.hbm [shape: f32[4,8,32], index: 0, kind: input, shape index: {}]
  %s1 = inlined_call_operand.hbm [shape: f32[4,8,32], index: 1, kind: input, shape index: {}]
  %s2 = inlined_call_operand.hbm [shape: f32[4,8,32], index: 2, kind: input, shape index: {}]
  %s3 = inlined_call_operand.vmem [shape: f32[4,1,8], index: 3, kind: input, shape index: {}]
  %s4 = inlined_call_operand.hbm [shape: f32[32,32], index: 4, kind: input, shape index: {}]
  %s5 = inlined_call_operand.hbm [shape: f32[32,32], index: 5, kind: input, shape index: {}]
  %s6 = inlined_call_operand.hbm [shape: f32[32,32], index: 6, kind: input, shape index: {}]
  %s7 = inlined_call_operand.hbm [shape: f32[4,8,32], index: 7, kind: output, shape index: {}]
  %s8 = sld [smem:[#allocation0]]
  $region62: #{tpu_custom_call.1} parent=0
    _
  %s10 = ssub.s32 1, %s8
  %s11 = scalar_select 0, %s10, %s8
  $region1: #{tpu_custom_call.1} parent=0
    #allocation2 [shape = 'u8[16384]{0}', space=vmem, size = 0x4000, scoped, tag = 'input window, operand 0, single buffered']
    #allocation3 [shape = 's32[1]{0}', space=sflag, size = 0x4, scoped, tag = 'scoped memory for tpu_custom_call.1']
    #allocation4 [shape = 's32[1]{0}', space=sflag, size = 0x4, scoped, tag = 'scoped memory for tpu_custom_call.1']
    #allocation5 [shape = 'u8[16384]{0}', space=vmem, size = 0x4000, scoped, tag = 'input window, operand 1, single buffered']
    #allocation6 [shape = 's32[1]{0}', space=sflag, size = 0x4, scoped, tag = 'scoped memory for tpu_custom_call.1']
    #allocation7 [shape = 'u8[16384]{0}', space=vmem, size = 0x4000, scoped, tag = 'input window, operand 2, single buffered']
    #allocation8 [shape = 'u8[16384]{0}', space=vmem, size = 0x4000, scoped, tag = 'input window, operand 4, single buffered']
    #allocation9 [shape = 's32[1]{0}', space=sflag, size = 0x4, scoped, tag = 'scoped memory for tpu_custom_call.1']
    #allocation10 [shape = 'u8[16384]{0}', space=vmem, size = 0x4000, scoped, tag = 'input window, operand 5, single buffered']
    #allocation11 [shape = 'u8[16384]{0}', space=vmem, size = 0x4000, scoped, tag = 'input window, operand 6, single buffered']
    #allocation12 [shape = 's32[1]{0}', space=sflag, size = 0x4, scoped, tag = 'scoped memory for tpu_custom_call.1']
    #allocation13 [shape = 'u8[16384]{0}', space=vmem, size = 0x4000, scoped, tag = 'output window, operand 0, single buffered']
    %12 = vsyncpa [#allocation3], 0
    %13 = vsyncpa [#allocation6], 0
    %14 = vsyncpa [#allocation9], 0
    %15 = vsyncpa [#allocation12], 0
    %16 = vsyncpa [#allocation4], 0
    // Predicated region
    $region2: #{tpu_custom_call.1} parent=1 // pred_check
      _
    $region3: #{tpu_custom_call.1} parent=1 // pred_check_branch
      %18 = sbr.rel (0) target = $region5
    $region4: #{tpu_custom_call.1} parent=1 // pred_region
      %s20 = ssub.s32 512, 512
      %21 = vsyncadd [#allocation3], %s20
      %s22 = sshll.u32 [#allocation2], 4
      %s23 = int_to_ptr.vmem [resolvable:$true] %s22
      %28 = dma.hbm_to_vmem [thread:$0]  %s0, 512, %s23, [#allocation3], 128, 128, 8
    $region5: #{tpu_custom_call.1} parent=1 // pred_fallthru
      _
    // Predicated region
    $region6: #{tpu_custom_call.1} parent=1 // pred_check
      _
    $region7: #{tpu_custom_call.1} parent=1 // pred_check_branch
      %30 = sbr.rel (0) target = $region9
    $region8: #{tpu_custom_call.1} parent=1 // pred_region
      %s32 = ssub.s32 512, 512
      %33 = vsyncadd [#allocation6], %s32
      %s34 = sshll.u32 [#allocation5], 4
      %s35 = int_to_ptr.vmem [resolvable:$true] %s34
      %40 = dma.hbm_to_vmem [thread:$0]  %s1, 512, %s35, [#allocation6], 128, 128, 8
    $region9: #{tpu_custom_call.1} parent=1 // pred_fallthru
      _
    // Predicated region
    $region10: #{tpu_custom_call.1} parent=1 // pred_check
      _
    $region11: #{tpu_custom_call.1} parent=1 // pred_check_branch
      %42 = sbr.rel (0) target = $region13
    $region12: #{tpu_custom_call.1} parent=1 // pred_region
      %s44 = ssub.s32 512, 512
      %45 = vsyncadd [#allocation6], %s44
      %s46 = sshll.u32 [#allocation7], 4
      %s47 = int_to_ptr.vmem [resolvable:$true] %s46
      %52 = dma.hbm_to_vmem [thread:$0]  %s2, 512, %s47, [#allocation6], 128, 128, 8
    $region13: #{tpu_custom_call.1} parent=1 // pred_fallthru
      _
    // Predicated region
    $region14: #{tpu_custom_call.1} parent=1 // pred_check
      _
    $region15: #{tpu_custom_call.1} parent=1 // pred_check_branch
      %54 = sbr.rel (0) target = $region17
    $region16: #{tpu_custom_call.1} parent=1 // pred_region
      _
    $region17: #{tpu_custom_call.1} parent=1 // pred_fallthru
      _
    // Predicated region
    $region18: #{tpu_custom_call.1} parent=1 // pred_check
      _
    $region19: #{tpu_custom_call.1} parent=1 // pred_check_branch
      %56 = sbr.rel (0) target = $region21
    $region20: #{tpu_custom_call.1} parent=1 // pred_region
      %s58 = ssub.s32 512, 512
      %59 = vsyncadd [#allocation9], %s58
      %s60 = sshll.u32 [#allocation8], 4
      %s61 = int_to_ptr.vmem [resolvable:$true] %s60
      %66 = dma.hbm_to_vmem [thread:$0]  %s4, 512, %s61, [#allocation9], 128, 128, 8
    $region21: #{tpu_custom_call.1} parent=1 // pred_fallthru
      _
    // Predicated region
    $region22: #{tpu_custom_call.1} parent=1 // pred_check
      _
    $region23: #{tpu_custom_call.1} parent=1 // pred_check_branch
      %68 = sbr.rel (0) target = $region25
    $region24: #{tpu_custom_call.1} parent=1 // pred_region
      %s70 = ssub.s32 512, 512
      %71 = vsyncadd [#allocation9], %s70
      %s72 = sshll.u32 [#allocation10], 4
      %s73 = int_to_ptr.vmem [resolvable:$true] %s72
      %78 = dma.hbm_to_vmem [thread:$0]  %s5, 512, %s73, [#allocation9], 128, 128, 8
    $region25: #{tpu_custom_call.1} parent=1 // pred_fallthru
      _
    // Predicated region
    $region26: #{tpu_custom_call.1} parent=1 // pred_check
      _
    $region27: #{tpu_custom_call.1} parent=1 // pred_check_branch
      %80 = sbr.rel (0) target = $region29
    $region28: #{tpu_custom_call.1} parent=1 // pred_region
      %s82 = ssub.s32 512, 512
      %83 = vsyncadd [#allocation12], %s82
      %s84 = sshll.u32 [#allocation11], 4
      %s85 = int_to_ptr.vmem [resolvable:$true] %s84
      %90 = dma.hbm_to_vmem [thread:$0]  %s6, 512, %s85, [#allocation12], 128, 128, 8
    $region29: #{tpu_custom_call.1} parent=1 // pred_fallthru
      _
    // Predicated region
    $region30: #{tpu_custom_call.1} parent=1 // pred_check
      _
    $region31: #{tpu_custom_call.1} parent=1 // pred_check_branch
      %92 = sbr.rel (0) target = $region33
    $region32: #{tpu_custom_call.1} parent=1 // pred_region
      %93 = dma.done [#allocation3], 512
    $region33: #{tpu_custom_call.1} parent=1 // pred_fallthru
      _
    // Predicated region
    $region34: #{tpu_custom_call.1} parent=1 // pred_check
      _
    $region35: #{tpu_custom_call.1} parent=1 // pred_check_branch
      %95 = sbr.rel (0) target = $region37
    $region36: #{tpu_custom_call.1} parent=1 // pred_region
      %96 = dma.done [#allocation6], 512
    $region37: #{tpu_custom_call.1} parent=1 // pred_fallthru
      _
    // Predicated region
    $region38: #{tpu_custom_call.1} parent=1 // pred_check
      _
    $region39: #{tpu_custom_call.1} parent=1 // pred_check_branch
      %98 = sbr.rel (0) target = $region41
    $region40: #{tpu_custom_call.1} parent=1 // pred_region
      %99 = dma.done [#allocation6], 512
    $region41: #{tpu_custom_call.1} parent=1 // pred_fallthru
      _
    // Predicated region
    $region42: #{tpu_custom_call.1} parent=1 // pred_check
      _
    $region43: #{tpu_custom_call.1} parent=1 // pred_check_branch
      %101 = sbr.rel (0) target = $region45
    $region44: #{tpu_custom_call.1} parent=1 // pred_region
      %102 = dma.done [#allocation9], 512
    $region45: #{tpu_custom_call.1} parent=1 // pred_fallthru
      _
    // Predicated region
    $region46: #{tpu_custom_call.1} parent=1 // pred_check
      _
    $region47: #{tpu_custom_call.1} parent=1 // pred_check_branch
      %104 = sbr.rel (0) target = $region49
    $region48: #{tpu_custom_call.1} parent=1 // pred_region
      %105 = dma.done [#allocation9], 512
    $region49: #{tpu_custom_call.1} parent=1 // pred_fallthru
      _
    // Predicated region
    $region50: #{tpu_custom_call.1} parent=1 // pred_check
      _
    $region51: #{tpu_custom_call.1} parent=1 // pred_check_branch
      %107 = sbr.rel (0) target = $region53
    $region52: #{tpu_custom_call.1} parent=1 // pred_region
      %108 = dma.done [#allocation12], 512
    $region53: #{tpu_custom_call.1} parent=1 // pred_fallthru
      _
    %v109 = vld [vmem:[#allocation2] sm:$0xff]
    %v110 = vld [vmem:[#allocation2 + $0x8] sm:$0xff]
    %v111 = vld [vmem:[#allocation2 + $0x10] sm:$0xff]
    %v112 = vld [vmem:[#allocation2 + $0x18] sm:$0xff]
    %v113 = vld [vmem:[#allocation8] sm:$0xff]
    %v114 = vld [vmem:[#allocation8 + $0x8] sm:$0xff]
    %v115 = vld [vmem:[#allocation8 + $0x10] sm:$0xff]
    %v116 = vld [vmem:[#allocation8 + $0x18] sm:$0xff]
    %vm117 = vcmask 261120
    %v119 = vsel %vm117, %v109, 0
    %v122 = vsel %vm117, %v110, 0
    %v125 = vsel %vm117, %v111, 0
    %v128 = vsel %vm117, %v112, 0
    %130 = vmatprep.subr.mxu0 0.0
    %131 = vmatpush1.msra.mxu0 %v113
    %132 = vmatprep.subr.mxu0 0.0
    %133 = vmatpush1.msra.mxu0 %v114
    %134 = vmatprep.subr.mxu0 0.0
    %135 = vmatpush1.msra.mxu0 %v115
    %136 = vmatprep.subr.mxu0 0.0
    %137 = vmatpush1.msra.mxu0 %v116
    %138 = vmatprep.subr.mxu0 0.0
    %139 = vmatpush1.msra.mxu0 0.0
    %140 = vmatprep.subr.mxu0 0.0
    %141 = vmatpush1.msra.mxu0 0.0
    %142 = vmatprep.subr.mxu0 0.0
    %143 = vmatpush1.msra.mxu0 0.0
    %144 = vmatprep.subr.mxu0 0.0
    %145 = vmatpush1.msra.mxu0 0.0
    %146 = vmatprep.subr.mxu0 0.0
    %147 = vmatpush1.msra.mxu0 0.0
    %148 = vmatprep.subr.mxu0 0.0
    %149 = vmatpush1.msra.mxu0 0.0
    %150 = vmatprep.subr.mxu0 0.0
    %151 = vmatpush1.msra.mxu0 0.0
    %152 = vmatprep.subr.mxu0 0.0
    %153 = vmatpush1.msra.mxu0 0.0
    %154 = vmatprep.subr.mxu0 0.0
    %155 = vmatpush1.msra.mxu0 0.0
    %156 = vmatprep.subr.mxu0 0.0
    %157 = vmatpush1.msra.mxu0 0.0
    %158 = vmatprep.subr.mxu0 0.0
    %159 = vmatpush1.msra.mxu0 0.0
    %160 = vmatprep.subr.mxu0 0.0
    %161 = vmatpush1.msra.mxu0 0.0
    %162 = vmatprep.subr.mxu0 0.0
    %163 = vmatpush1.msra.mxu0 0.0
    %164 = vmatprep.subr.mxu0 0.0
    %165 = vmatpush1.msra.mxu0 0.0
    %166 = vmatprep.subr.mxu0 0.0
    %167 = vmatpush1.msra.mxu0 0.0
    %168 = vmatprep.subr.mxu0 0.0
    %169 = vmatpush1.msra.mxu0 0.0
    %170 = vmatprep.subr.mxu0 0.0
    %171 = vmatpush1.msra.mxu0 0.0
    %172 = vmatprep.subr.mxu0 0.0
    %173 = vmatpush1.msra.mxu0 0.0
    %174 = vmatprep.subr.mxu0 0.0
    %175 = vmatpush1.msra.mxu0 0.0
    %176 = vmatprep.subr.mxu0 0.0
    %177 = vmatpush1.msra.mxu0 0.0
    %178 = vmatprep.subr.mxu0 0.0
    %179 = vmatpush1.msra.mxu0 0.0
    %180 = vmatprep.subr.mxu0 0.0
    %181 = vmatpush1.msra.mxu0 0.0
    %182 = vmatprep.subr.mxu0 0.0
    %183 = vmatpush1.msra.mxu0 0.0
    %184 = vmatprep.subr.mxu0 0.0
    %185 = vmatpush1.msra.mxu0 0.0
    %186 = vmatprep.subr.mxu0 0.0
    %187 = vmatpush1.msra.mxu0 0.0
    %188 = vmatprep.subr.mxu0 0.0
    %189 = vmatpush1.msra.mxu0 0.0
    %190 = vmatprep.subr.mxu0 0.0
    %191 = vmatpush1.msra.mxu0 0.0
    %192 = vmatprep.subr.mxu0 0.0
    %193 = vmatpush1.msra.mxu0 0.0
    %194 = vmatprep.mubr.f32.mxu0 0.0
    %195 = vmatmul.mubr.f32.gmra.mrb[0].mxu0 %v119
    %v196 = vpop.f32.mrb[0].mxu0
    %v197 = vadd.f32 0.0, %v196
    %v198 = vpop.f32.mrb[0].mxu0
    %199 = vmatprep.mubr.f32.mxu0 0.0
    %200 = vmatmul.mubr.f32.gmra.mrb[0].mxu0 %v122
    %v201 = vpop.f32.mrb[0].mxu0
    %v202 = vadd.f32 0.0, %v201
    %v203 = vpop.f32.mrb[0].mxu0
    %204 = vmatprep.mubr.f32.mxu0 0.0
    %205 = vmatmul.mubr.f32.gmra.mrb[0].mxu0 %v125
    %v206 = vpop.f32.mrb[0].mxu0
    %v207 = vadd.f32 0.0, %v206
    %v208 = vpop.f32.mrb[0].mxu0
    %209 = vmatprep.mubr.f32.mxu0 0.0
    %210 = vmatmul.mubr.f32.gmra.mrb[0].mxu0 %v128
    %v211 = vpop.f32.mrb[0].mxu0
    %v212 = vadd.f32 0.0, %v211
    %v213 = vpop.f32.mrb[0].mxu0
    %214 = vdwg.mxu0
    %v215 = vld [vmem:[#allocation5] sm:$0xff]
    %v216 = vld [vmem:[#allocation5 + $0x8] sm:$0xff]
    %v217 = vld [vmem:[#allocation5 + $0x10] sm:$0xff]
    %v218 = vld [vmem:[#allocation5 + $0x18] sm:$0xff]
    %v219 = vld [vmem:[#allocation10] sm:$0xff]
    %v220 = vld [vmem:[#allocation10 + $0x8] sm:$0xff]
    %v221 = vld [vmem:[#allocation10 + $0x10] sm:$0xff]
    %v222 = vld [vmem:[#allocation10 + $0x18] sm:$0xff]
    %v224 = vsel %vm117, %v215, 0
    %v227 = vsel %vm117, %v216, 0
    %v230 = vsel %vm117, %v217, 0
    %v233 = vsel %vm117, %v218, 0
    %235 = vmatprep.subr.mxu0 0.0
    %236 = vmatpush1.msra.mxu0 %v219
    %237 = vmatprep.subr.mxu0 0.0
    %238 = vmatpush1.msra.mxu0 %v220
    %239 = vmatprep.subr.mxu0 0.0
    %240 = vmatpush1.msra.mxu0 %v221
    %241 = vmatprep.subr.mxu0 0.0
    %242 = vmatpush1.msra.mxu0 %v222
    %243 = vmatprep.subr.mxu0 0.0
    %244 = vmatpush1.msra.mxu0 0.0
    %245 = vmatprep.subr.mxu0 0.0
    %246 = vmatpush1.msra.mxu0 0.0
    %247 = vmatprep.subr.mxu0 0.0
    %248 = vmatpush1.msra.mxu0 0.0
    %249 = vmatprep.subr.mxu0 0.0
    %250 = vmatpush1.msra.mxu0 0.0
    %251 = vmatprep.subr.mxu0 0.0
    %252 = vmatpush1.msra.mxu0 0.0
    %253 = vmatprep.subr.mxu0 0.0
    %254 = vmatpush1.msra.mxu0 0.0
    %255 = vmatprep.subr.mxu0 0.0
    %256 = vmatpush1.msra.mxu0 0.0
    %257 = vmatprep.subr.mxu0 0.0
    %258 = vmatpush1.msra.mxu0 0.0
    %259 = vmatprep.subr.mxu0 0.0
    %260 = vmatpush1.msra.mxu0 0.0
    %261 = vmatprep.subr.mxu0 0.0
    %262 = vmatpush1.msra.mxu0 0.0
    %263 = vmatprep.subr.mxu0 0.0
    %264 = vmatpush1.msra.mxu0 0.0
    %265 = vmatprep.subr.mxu0 0.0
    %266 = vmatpush1.msra.mxu0 0.0
    %267 = vmatprep.subr.mxu0 0.0
    %268 = vmatpush1.msra.mxu0 0.0
    %269 = vmatprep.subr.mxu0 0.0
    %270 = vmatpush1.msra.mxu0 0.0
    %271 = vmatprep.subr.mxu0 0.0
    %272 = vmatpush1.msra.mxu0 0.0
    %273 = vmatprep.subr.mxu0 0.0
    %274 = vmatpush1.msra.mxu0 0.0
    %275 = vmatprep.subr.mxu0 0.0
    %276 = vmatpush1.msra.mxu0 0.0
    %277 = vmatprep.subr.mxu0 0.0
    %278 = vmatpush1.msra.mxu0 0.0
    %279 = vmatprep.subr.mxu0 0.0
    %280 = vmatpush1.msra.mxu0 0.0
    %281 = vmatprep.subr.mxu0 0.0
    %282 = vmatpush1.msra.mxu0 0.0
    %283 = vmatprep.subr.mxu0 0.0
    %284 = vmatpush1.msra.mxu0 0.0
    %285 = vmatprep.subr.mxu0 0.0
    %286 = vmatpush1.msra.mxu0 0.0
    %287 = vmatprep.subr.mxu0 0.0
    %288 = vmatpush1.msra.mxu0 0.0
    %289 = vmatprep.subr.mxu0 0.0
    %290 = vmatpush1.msra.mxu0 0.0
    %291 = vmatprep.subr.mxu0 0.0
    %292 = vmatpush1.msra.mxu0 0.0
    %293 = vmatprep.subr.mxu0 0.0
    %294 = vmatpush1.msra.mxu0 0.0
    %295 = vmatprep.subr.mxu0 0.0
    %296 = vmatpush1.msra.mxu0 0.0
    %297 = vmatprep.subr.mxu0 0.0
    %298 = vmatpush1.msra.mxu0 0.0
    %299 = vmatprep.mubr.f32.mxu0 0.0
    %300 = vmatmul.mubr.f32.gmra.mrb[0].mxu0 %v224
    %v301 = vpop.f32.mrb[0].mxu0
    %v302 = vadd.f32 0.0, %v301
    %v303 = vpop.f32.mrb[0].mxu0
    %304 = vmatprep.mubr.f32.mxu0 0.0
    %305 = vmatmul.mubr.f32.gmra.mrb[0].mxu0 %v227
    %v306 = vpop.f32.mrb[0].mxu0
    %v307 = vadd.f32 0.0, %v306
    %v308 = vpop.f32.mrb[0].mxu0
    %309 = vmatprep.mubr.f32.mxu0 0.0
    %310 = vmatmul.mubr.f32.gmra.mrb[0].mxu0 %v230
    %v311 = vpop.f32.mrb[0].mxu0
    %v312 = vadd.f32 0.0, %v311
    %v313 = vpop.f32.mrb[0].mxu0
    %314 = vmatprep.mubr.f32.mxu0 0.0
    %315 = vmatmul.mubr.f32.gmra.mrb[0].mxu0 %v233
    %v316 = vpop.f32.mrb[0].mxu0
    %v317 = vadd.f32 0.0, %v316
    %v318 = vpop.f32.mrb[0].mxu0
    %319 = vdwg.mxu0
    %v320 = vld [vmem:[#allocation7] sm:$0xff]
    %v321 = vld [vmem:[#allocation7 + $0x8] sm:$0xff]
    %v322 = vld [vmem:[#allocation7 + $0x10] sm:$0xff]
    %v323 = vld [vmem:[#allocation7 + $0x18] sm:$0xff]
    %v324 = vld [vmem:[#allocation11] sm:$0xff]
    %v325 = vld [vmem:[#allocation11 + $0x8] sm:$0xff]
    %v326 = vld [vmem:[#allocation11 + $0x10] sm:$0xff]
    %v327 = vld [vmem:[#allocation11 + $0x18] sm:$0xff]
    %v329 = vsel %vm117, %v320, 0
    %v332 = vsel %vm117, %v321, 0
    %v335 = vsel %vm117, %v322, 0
    %v338 = vsel %vm117, %v323, 0
    %340 = vmatprep.subr.mxu0 0.0
    %341 = vmatpush1.msra.mxu0 %v324
    %342 = vmatprep.subr.mxu0 0.0
    %343 = vmatpush1.msra.mxu0 %v325
    %344 = vmatprep.subr.mxu0 0.0
    %345 = vmatpush1.msra.mxu0 %v326
    %346 = vmatprep.subr.mxu0 0.0
    %347 = vmatpush1.msra.mxu0 %v327
    %348 = vmatprep.subr.mxu0 0.0
    %349 = vmatpush1.msra.mxu0 0.0
    %350 = vmatprep.subr.mxu0 0.0
    %351 = vmatpush1.msra.mxu0 0.0
    %352 = vmatprep.subr.mxu0 0.0
    %353 = vmatpush1.msra.mxu0 0.0
    %354 = vmatprep.subr.mxu0 0.0
    %355 = vmatpush1.msra.mxu0 0.0
    %356 = vmatprep.subr.mxu0 0.0
    %357 = vmatpush1.msra.mxu0 0.0
    %358 = vmatprep.subr.mxu0 0.0
    %359 = vmatpush1.msra.mxu0 0.0
    %360 = vmatprep.subr.mxu0 0.0
    %361 = vmatpush1.msra.mxu0 0.0
    %362 = vmatprep.subr.mxu0 0.0
    %363 = vmatpush1.msra.mxu0 0.0
    %364 = vmatprep.subr.mxu0 0.0
    %365 = vmatpush1.msra.mxu0 0.0
    %366 = vmatprep.subr.mxu0 0.0
    %367 = vmatpush1.msra.mxu0 0.0
    %368 = vmatprep.subr.mxu0 0.0
    %369 = vmatpush1.msra.mxu0 0.0
    %370 = vmatprep.subr.mxu0 0.0
    %371 = vmatpush1.msra.mxu0 0.0
    %372 = vmatprep.subr.mxu0 0.0
    %373 = vmatpush1.msra.mxu0 0.0
    %374 = vmatprep.subr.mxu0 0.0
    %375 = vmatpush1.msra.mxu0 0.0
    %376 = vmatprep.subr.mxu0 0.0
    %377 = vmatpush1.msra.mxu0 0.0
    %378 = vmatprep.subr.mxu0 0.0
    %379 = vmatpush1.msra.mxu0 0.0
    %380 = vmatprep.subr.mxu0 0.0
    %381 = vmatpush1.msra.mxu0 0.0
    %382 = vmatprep.subr.mxu0 0.0
    %383 = vmatpush1.msra.mxu0 0.0
    %384 = vmatprep.subr.mxu0 0.0
    %385 = vmatpush1.msra.mxu0 0.0
    %386 = vmatprep.subr.mxu0 0.0
    %387 = vmatpush1.msra.mxu0 0.0
    %388 = vmatprep.subr.mxu0 0.0
    %389 = vmatpush1.msra.mxu0 0.0
    %390 = vmatprep.subr.mxu0 0.0
    %391 = vmatpush1.msra.mxu0 0.0
    %392 = vmatprep.subr.mxu0 0.0
    %393 = vmatpush1.msra.mxu0 0.0
    %394 = vmatprep.subr.mxu0 0.0
    %395 = vmatpush1.msra.mxu0 0.0
    %396 = vmatprep.subr.mxu0 0.0
    %397 = vmatpush1.msra.mxu0 0.0
    %398 = vmatprep.subr.mxu0 0.0
    %399 = vmatpush1.msra.mxu0 0.0
    %400 = vmatprep.subr.mxu0 0.0
    %401 = vmatpush1.msra.mxu0 0.0
    %402 = vmatprep.subr.mxu0 0.0
    %403 = vmatpush1.msra.mxu0 0.0
    %404 = vmatprep.mubr.f32.mxu0 0.0
    %405 = vmatmul.mubr.f32.gmra.mrb[0].mxu0 %v329
    %v406 = vpop.f32.mrb[0].mxu0
    %v407 = vadd.f32 0.0, %v406
    %v408 = vpop.f32.mrb[0].mxu0
    %409 = vmatprep.mubr.f32.mxu0 0.0
    %410 = vmatmul.mubr.f32.gmra.mrb[0].mxu0 %v332
    %v411 = vpop.f32.mrb[0].mxu0
    %v412 = vadd.f32 0.0, %v411
    %v413 = vpop.f32.mrb[0].mxu0
    %414 = vmatprep.mubr.f32.mxu0 0.0
    %415 = vmatmul.mubr.f32.gmra.mrb[0].mxu0 %v335
    %v416 = vpop.f32.mrb[0].mxu0
    %v417 = vadd.f32 0.0, %v416
    %v418 = vpop.f32.mrb[0].mxu0
    %419 = vmatprep.mubr.f32.mxu0 0.0
    %420 = vmatmul.mubr.f32.gmra.mrb[0].mxu0 %v338
    %v421 = vpop.f32.mrb[0].mxu0
    %v422 = vadd.f32 0.0, %v421
    %v423 = vpop.f32.mrb[0].mxu0
    %424 = vdwg.mxu0
    %v425 = vld [vmem:[%s3] sm:$0x1]
    %v426 = vld [vmem:[%s3 + $0x1] sm:$0x1]
    %v427 = vld [vmem:[%s3 + $0x2] sm:$0x1]
    %v428 = vld [vmem:[%s3 + $0x3] sm:$0x1]
    %vm429 = vcmask 130048
    %v431 = vsel %vm429, %v197, 0
    %v434 = vsel %vm429, %v302, 0
    %436 = vmatprep.subr.mxu0 0.0
    %437 = vmatpush1.xpose.msra.mxu0 %v434
    %438 = vmatprep.subr.mxu0 0.0
    %439 = vmatpush1.xpose.msra.mxu0 0.0
    %440 = vmatprep.subr.mxu0 0.0
    %441 = vmatpush1.xpose.msra.mxu0 0.0
    %442 = vmatprep.subr.mxu0 0.0
    %443 = vmatpush1.xpose.msra.mxu0 0.0
    %444 = vmatprep.subr.mxu0 0.0
    %445 = vmatpush1.xpose.msra.mxu0 0.0
    %446 = vmatprep.subr.mxu0 0.0
    %447 = vmatpush1.xpose.msra.mxu0 0.0
    %448 = vmatprep.subr.mxu0 0.0
    %449 = vmatpush1.xpose.msra.mxu0 0.0
    %450 = vmatprep.subr.mxu0 0.0
    %451 = vmatpush1.xpose.msra.mxu0 0.0
    %452 = vmatprep.subr.mxu0 0.0
    %453 = vmatpush1.xpose.msra.mxu0 0.0
    %454 = vmatprep.subr.mxu0 0.0
    %455 = vmatpush1.xpose.msra.mxu0 0.0
    %456 = vmatprep.subr.mxu0 0.0
    %457 = vmatpush1.xpose.msra.mxu0 0.0
    %458 = vmatprep.subr.mxu0 0.0
    %459 = vmatpush1.xpose.msra.mxu0 0.0
    %460 = vmatprep.subr.mxu0 0.0
    %461 = vmatpush1.xpose.msra.mxu0 0.0
    %462 = vmatprep.subr.mxu0 0.0
    %463 = vmatpush1.xpose.msra.mxu0 0.0
    %464 = vmatprep.subr.mxu0 0.0
    %465 = vmatpush1.xpose.msra.mxu0 0.0
    %466 = vmatprep.subr.mxu0 0.0
    %467 = vmatpush1.xpose.msra.mxu0 0.0
    %468 = vmatprep.subr.mxu0 0.0
    %469 = vmatpush1.xpose.msra.mxu0 0.0
    %470 = vmatprep.subr.mxu0 0.0
    %471 = vmatpush1.xpose.msra.mxu0 0.0
    %472 = vmatprep.subr.mxu0 0.0
    %473 = vmatpush1.xpose.msra.mxu0 0.0
    %474 = vmatprep.subr.mxu0 0.0
    %475 = vmatpush1.xpose.msra.mxu0 0.0
    %476 = vmatprep.subr.mxu0 0.0
    %477 = vmatpush1.xpose.msra.mxu0 0.0
    %478 = vmatprep.subr.mxu0 0.0
    %479 = vmatpush1.xpose.msra.mxu0 0.0
    %480 = vmatprep.subr.mxu0 0.0
    %481 = vmatpush1.xpose.msra.mxu0 0.0
    %482 = vmatprep.subr.mxu0 0.0
    %483 = vmatpush1.xpose.msra.mxu0 0.0
    %484 = vmatprep.subr.mxu0 0.0
    %485 = vmatpush1.xpose.msra.mxu0 0.0
    %486 = vmatprep.subr.mxu0 0.0
    %487 = vmatpush1.xpose.msra.mxu0 0.0
    %488 = vmatprep.subr.mxu0 0.0
    %489 = vmatpush1.xpose.msra.mxu0 0.0
    %490 = vmatprep.subr.mxu0 0.0
    %491 = vmatpush1.xpose.msra.mxu0 0.0
    %492 = vmatprep.subr.mxu0 0.0
    %493 = vmatpush1.xpose.msra.mxu0 0.0
    %494 = vmatprep.subr.mxu0 0.0
    %495 = vmatpush1.xpose.msra.mxu0 0.0
    %496 = vmatprep.subr.mxu0 0.0
    %497 = vmatpush1.xpose.msra.mxu0 0.0
    %498 = vmatprep.subr.mxu0 0.0
    %499 = vmatpush1.xpose.msra.mxu0 0.0
    %500 = vmatprep.mubr.f32.mxu0 0.0
    %501 = vmatmul.mubr.f32.gmra.mrb[0].mxu0 %v431
    %v502 = vpop.f32.mrb[0].mxu0
    %v503 = vadd.f32 0.0, %v502
    %v504 = vpop.f32.mrb[0].mxu0
    %505 = vdwg.mxu0
    %v507 = vsel %vm429, %v202, 0
    %v510 = vsel %vm429, %v307, 0
    %512 = vmatprep.subr.mxu0 0.0
    %513 = vmatpush1.xpose.msra.mxu0 %v510
    %514 = vmatprep.subr.mxu0 0.0
    %515 = vmatpush1.xpose.msra.mxu0 0.0
    %516 = vmatprep.subr.mxu0 0.0
    %517 = vmatpush1.xpose.msra.mxu0 0.0
    %518 = vmatprep.subr.mxu0 0.0
    %519 = vmatpush1.xpose.msra.mxu0 0.0
    %520 = vmatprep.subr.mxu0 0.0
    %521 = vmatpush1.xpose.msra.mxu0 0.0
    %522 = vmatprep.subr.mxu0 0.0
    %523 = vmatpush1.xpose.msra.mxu0 0.0
    %524 = vmatprep.subr.mxu0 0.0
    %525 = vmatpush1.xpose.msra.mxu0 0.0
    %526 = vmatprep.subr.mxu0 0.0
    %527 = vmatpush1.xpose.msra.mxu0 0.0
    %528 = vmatprep.subr.mxu0 0.0
    %529 = vmatpush1.xpose.msra.mxu0 0.0
    %530 = vmatprep.subr.mxu0 0.0
    %531 = vmatpush1.xpose.msra.mxu0 0.0
    %532 = vmatprep.subr.mxu0 0.0
    %533 = vmatpush1.xpose.msra.mxu0 0.0
    %534 = vmatprep.subr.mxu0 0.0
    %535 = vmatpush1.xpose.msra.mxu0 0.0
    %536 = vmatprep.subr.mxu0 0.0
    %537 = vmatpush1.xpose.msra.mxu0 0.0
    %538 = vmatprep.subr.mxu0 0.0
    %539 = vmatpush1.xpose.msra.mxu0 0.0
    %540 = vmatprep.subr.mxu0 0.0
    %541 = vmatpush1.xpose.msra.mxu0 0.0
    %542 = vmatprep.subr.mxu0 0.0
    %543 = vmatpush1.xpose.msra.mxu0 0.0
    %544 = vmatprep.subr.mxu0 0.0
    %545 = vmatpush1.xpose.msra.mxu0 0.0
    %546 = vmatprep.subr.mxu0 0.0
    %547 = vmatpush1.xpose.msra.mxu0 0.0
    %548 = vmatprep.subr.mxu0 0.0
    %549 = vmatpush1.xpose.msra.mxu0 0.0
    %550 = vmatprep.subr.mxu0 0.0
    %551 = vmatpush1.xpose.msra.mxu0 0.0
    %552 = vmatprep.subr.mxu0 0.0
    %553 = vmatpush1.xpose.msra.mxu0 0.0
    %554 = vmatprep.subr.mxu0 0.0
    %555 = vmatpush1.xpose.msra.mxu0 0.0
    %556 = vmatprep.subr.mxu0 0.0
    %557 = vmatpush1.xpose.msra.mxu0 0.0
    %558 = vmatprep.subr.mxu0 0.0
    %559 = vmatpush1.xpose.msra.mxu0 0.0
    %560 = vmatprep.subr.mxu0 0.0
    %561 = vmatpush1.xpose.msra.mxu0 0.0
    %562 = vmatprep.subr.mxu0 0.0
    %563 = vmatpush1.xpose.msra.mxu0 0.0
    %564 = vmatprep.subr.mxu0 0.0
    %565 = vmatpush1.xpose.msra.mxu0 0.0
    %566 = vmatprep.subr.mxu0 0.0
    %567 = vmatpush1.xpose.msra.mxu0 0.0
    %568 = vmatprep.subr.mxu0 0.0
    %569 = vmatpush1.xpose.msra.mxu0 0.0
    %570 = vmatprep.subr.mxu0 0.0
    %571 = vmatpush1.xpose.msra.mxu0 0.0
    %572 = vmatprep.subr.mxu0 0.0
    %573 = vmatpush1.xpose.msra.mxu0 0.0
    %574 = vmatprep.subr.mxu0 0.0
    %575 = vmatpush1.xpose.msra.mxu0 0.0
    %576 = vmatprep.mubr.f32.mxu0 0.0
    %577 = vmatmul.mubr.f32.gmra.mrb[0].mxu0 %v507
    %v578 = vpop.f32.mrb[0].mxu0
    %v579 = vadd.f32 0.0, %v578
    %v580 = vpop.f32.mrb[0].mxu0
    %581 = vdwg.mxu0
    %v583 = vsel %vm429, %v207, 0
    %v586 = vsel %vm429, %v312, 0
    %588 = vmatprep.subr.mxu0 0.0
    %589 = vmatpush1.xpose.msra.mxu0 %v586
    %590 = vmatprep.subr.mxu0 0.0
    %591 = vmatpush1.xpose.msra.mxu0 0.0
    %592 = vmatprep.subr.mxu0 0.0
    %593 = vmatpush1.xpose.msra.mxu0 0.0
    %594 = vmatprep.subr.mxu0 0.0
    %595 = vmatpush1.xpose.msra.mxu0 0.0
    %596 = vmatprep.subr.mxu0 0.0
    %597 = vmatpush1.xpose.msra.mxu0 0.0
    %598 = vmatprep.subr.mxu0 0.0
    %599 = vmatpush1.xpose.msra.mxu0 0.0
    %600 = vmatprep.subr.mxu0 0.0
    %601 = vmatpush1.xpose.msra.mxu0 0.0
    %602 = vmatprep.subr.mxu0 0.0
    %603 = vmatpush1.xpose.msra.mxu0 0.0
    %604 = vmatprep.subr.mxu0 0.0
    %605 = vmatpush1.xpose.msra.mxu0 0.0
    %606 = vmatprep.subr.mxu0 0.0
    %607 = vmatpush1.xpose.msra.mxu0 0.0
    %608 = vmatprep.subr.mxu0 0.0
    %609 = vmatpush1.xpose.msra.mxu0 0.0
    %610 = vmatprep.subr.mxu0 0.0
    %611 = vmatpush1.xpose.msra.mxu0 0.0
    %612 = vmatprep.subr.mxu0 0.0
    %613 = vmatpush1.xpose.msra.mxu0 0.0
    %614 = vmatprep.subr.mxu0 0.0
    %615 = vmatpush1.xpose.msra.mxu0 0.0
    %616 = vmatprep.subr.mxu0 0.0
    %617 = vmatpush1.xpose.msra.mxu0 0.0
    %618 = vmatprep.subr.mxu0 0.0
    %619 = vmatpush1.xpose.msra.mxu0 0.0
    %620 = vmatprep.subr.mxu0 0.0
    %621 = vmatpush1.xpose.msra.mxu0 0.0
    %622 = vmatprep.subr.mxu0 0.0
    %623 = vmatpush1.xpose.msra.mxu0 0.0
    %624 = vmatprep.subr.mxu0 0.0
    %625 = vmatpush1.xpose.msra.mxu0 0.0
    %626 = vmatprep.subr.mxu0 0.0
    %627 = vmatpush1.xpose.msra.mxu0 0.0
    %628 = vmatprep.subr.mxu0 0.0
    %629 = vmatpush1.xpose.msra.mxu0 0.0
    %630 = vmatprep.subr.mxu0 0.0
    %631 = vmatpush1.xpose.msra.mxu0 0.0
    %632 = vmatprep.subr.mxu0 0.0
    %633 = vmatpush1.xpose.msra.mxu0 0.0
    %634 = vmatprep.subr.mxu0 0.0
    %635 = vmatpush1.xpose.msra.mxu0 0.0
    %636 = vmatprep.subr.mxu0 0.0
    %637 = vmatpush1.xpose.msra.mxu0 0.0
    %638 = vmatprep.subr.mxu0 0.0
    %639 = vmatpush1.xpose.msra.mxu0 0.0
    %640 = vmatprep.subr.mxu0 0.0
    %641 = vmatpush1.xpose.msra.mxu0 0.0
    %642 = vmatprep.subr.mxu0 0.0
    %643 = vmatpush1.xpose.msra.mxu0 0.0
    %644 = vmatprep.subr.mxu0 0.0
    %645 = vmatpush1.xpose.msra.mxu0 0.0
    %646 = vmatprep.subr.mxu0 0.0
    %647 = vmatpush1.xpose.msra.mxu0 0.0
    %648 = vmatprep.subr.mxu0 0.0
    %649 = vmatpush1.xpose.msra.mxu0 0.0
    %650 = vmatprep.subr.mxu0 0.0
    %651 = vmatpush1.xpose.msra.mxu0 0.0
    %652 = vmatprep.mubr.f32.mxu0 0.0
    %653 = vmatmul.mubr.f32.gmra.mrb[0].mxu0 %v583
    %v654 = vpop.f32.mrb[0].mxu0
    %v655 = vadd.f32 0.0, %v654
    %v656 = vpop.f32.mrb[0].mxu0
    %657 = vdwg.mxu0
    %v659 = vsel %vm429, %v212, 0
    %v662 = vsel %vm429, %v317, 0
    %664 = vmatprep.subr.mxu0 0.0
    %665 = vmatpush1.xpose.msra.mxu0 %v662
    %666 = vmatprep.subr.mxu0 0.0
    %667 = vmatpush1.xpose.msra.mxu0 0.0
    %668 = vmatprep.subr.mxu0 0.0
    %669 = vmatpush1.xpose.msra.mxu0 0.0
    %670 = vmatprep.subr.mxu0 0.0
    %671 = vmatpush1.xpose.msra.mxu0 0.0
    %672 = vmatprep.subr.mxu0 0.0
    %673 = vmatpush1.xpose.msra.mxu0 0.0
    %674 = vmatprep.subr.mxu0 0.0
    %675 = vmatpush1.xpose.msra.mxu0 0.0
    %676 = vmatprep.subr.mxu0 0.0
    %677 = vmatpush1.xpose.msra.mxu0 0.0
    %678 = vmatprep.subr.mxu0 0.0
    %679 = vmatpush1.xpose.msra.mxu0 0.0
    %680 = vmatprep.subr.mxu0 0.0
    %681 = vmatpush1.xpose.msra.mxu0 0.0
    %682 = vmatprep.subr.mxu0 0.0
    %683 = vmatpush1.xpose.msra.mxu0 0.0
    %684 = vmatprep.subr.mxu0 0.0
    %685 = vmatpush1.xpose.msra.mxu0 0.0
    %686 = vmatprep.subr.mxu0 0.0
    %687 = vmatpush1.xpose.msra.mxu0 0.0
    %688 = vmatprep.subr.mxu0 0.0
    %689 = vmatpush1.xpose.msra.mxu0 0.0
    %690 = vmatprep.subr.mxu0 0.0
    %691 = vmatpush1.xpose.msra.mxu0 0.0
    %692 = vmatprep.subr.mxu0 0.0
    %693 = vmatpush1.xpose.msra.mxu0 0.0
    %694 = vmatprep.subr.mxu0 0.0
    %695 = vmatpush1.xpose.msra.mxu0 0.0
    %696 = vmatprep.subr.mxu0 0.0
    %697 = vmatpush1.xpose.msra.mxu0 0.0
    %698 = vmatprep.subr.mxu0 0.0
    %699 = vmatpush1.xpose.msra.mxu0 0.0
    %700 = vmatprep.subr.mxu0 0.0
    %701 = vmatpush1.xpose.msra.mxu0 0.0
    %702 = vmatprep.subr.mxu0 0.0
    %703 = vmatpush1.xpose.msra.mxu0 0.0
    %704 = vmatprep.subr.mxu0 0.0
    %705 = vmatpush1.xpose.msra.mxu0 0.0
    %706 = vmatprep.subr.mxu0 0.0
    %707 = vmatpush1.xpose.msra.mxu0 0.0
    %708 = vmatprep.subr.mxu0 0.0
    %709 = vmatpush1.xpose.msra.mxu0 0.0
    %710 = vmatprep.subr.mxu0 0.0
    %711 = vmatpush1.xpose.msra.mxu0 0.0
    %712 = vmatprep.subr.mxu0 0.0
    %713 = vmatpush1.xpose.msra.mxu0 0.0
    %714 = vmatprep.subr.mxu0 0.0
    %715 = vmatpush1.xpose.msra.mxu0 0.0
    %716 = vmatprep.subr.mxu0 0.0
    %717 = vmatpush1.xpose.msra.mxu0 0.0
    %718 = vmatprep.subr.mxu0 0.0
    %719 = vmatpush1.xpose.msra.mxu0 0.0
    %720 = vmatprep.subr.mxu0 0.0
    %721 = vmatpush1.xpose.msra.mxu0 0.0
    %722 = vmatprep.subr.mxu0 0.0
    %723 = vmatpush1.xpose.msra.mxu0 0.0
    %724 = vmatprep.subr.mxu0 0.0
    %725 = vmatpush1.xpose.msra.mxu0 0.0
    %726 = vmatprep.subr.mxu0 0.0
    %727 = vmatpush1.xpose.msra.mxu0 0.0
    %728 = vmatprep.mubr.f32.mxu0 0.0
    %729 = vmatmul.mubr.f32.gmra.mrb[0].mxu0 %v659
    %v730 = vpop.f32.mrb[0].mxu0
    %v731 = vadd.f32 0.0, %v730
    %v732 = vpop.f32.mrb[0].mxu0
    %733 = vdwg.mxu0
    %v734 = vmul.f32 %v503, 0.25
    %v735 = vmul.f32 %v579, 0.25
    %v736 = vmul.f32 %v655, 0.25
    %v737 = vmul.f32 %v731, 0.25
    %v742 = vlaneseq
    %v743 = vshrl.u32 %v742, 7
    %v744 = vsub.s32 0, %v743
    %v745 = vrot.slane %v425, %v744
    %v746 = vlaneseq
    %v747 = vshrl.u32 %v746, 7
    %v748 = vsub.s32 0, %v747
    %v749 = vrot.slane %v426, %v748
    %v750 = vlaneseq
    %v751 = vshrl.u32 %v750, 7
    %v752 = vsub.s32 0, %v751
    %v753 = vrot.slane %v427, %v752
    %v754 = vlaneseq
    %v755 = vshrl.u32 %v754, 7
    %v756 = vsub.s32 0, %v755
    %v757 = vrot.slane %v428, %v756
    %v762 = vadd.f32 %v734, %v745
    %v763 = vadd.f32 %v735, %v749
    %v764 = vadd.f32 %v736, %v753
    %v765 = vadd.f32 %v737, %v757
    %vm766 = vcmask 64512
    %v767 = vsel %vm766, %v762, -inf
    %768 = vmax.xlane.f32.xlu0 %v767
    %v769 = vpop.xlane.xlu0 %768
    %v770 = vsel %vm766, %v763, -inf
    %771 = vmax.xlane.f32.xlu0 %v770
    %v772 = vpop.xlane.xlu0 %771
    %v773 = vsel %vm766, %v764, -inf
    %774 = vmax.xlane.f32.xlu0 %v773
    %v775 = vpop.xlane.xlu0 %774
    %v776 = vsel %vm766, %v765, -inf
    %777 = vmax.xlane.f32.xlu0 %v776
    %v778 = vpop.xlane.xlu0 %777
    %v779 = vsub.f32 %v762, %v769
    %v780 = vsub.f32 %v763, %v772
    %v781 = vsub.f32 %v764, %v775
    %v782 = vsub.f32 %v765, %v778
    %v783 = vmul.f32 %v779, 1.442695
    %v784 = vpow.pop %v783
    %v785 = vmul.f32 %v780, 1.442695
    %v786 = vpow.pop %v785
    %v787 = vmul.f32 %v781, 1.442695
    %v788 = vpow.pop %v787
    %v789 = vmul.f32 %v782, 1.442695
    %v790 = vpow.pop %v789
    %v791 = vsel %vm766, %v784, 0.0
    %792 = vadd.xlane.f32.xlu0 %v791
    %v793 = vpop.xlane.xlu0 %792
    %v794 = vsel %vm766, %v786, 0.0
    %795 = vadd.xlane.f32.xlu0 %v794
    %v796 = vpop.xlane.xlu0 %795
    %v797 = vsel %vm766, %v788, 0.0
    %798 = vadd.xlane.f32.xlu0 %v797
    %v799 = vpop.xlane.xlu0 %798
    %v800 = vsel %vm766, %v790, 0.0
    %801 = vadd.xlane.f32.xlu0 %v800
    %v802 = vpop.xlane.xlu0 %801
    %v803 = vrcp.pop %v793
    %v804 = vrcp.pop %v796
    %v805 = vrcp.pop %v799
    %v806 = vrcp.pop %v802
    %v807 = vmul.f32 %v793, %v803
    %v808 = vmul.f32 %v796, %v804
    %v809 = vmul.f32 %v799, %v805
    %v810 = vmul.f32 %v802, %v806
    %v811 = vsub.f32 2.0, %v807
    %v812 = vsub.f32 2.0, %v808
    %v813 = vsub.f32 2.0, %v809
    %v814 = vsub.f32 2.0, %v810
    %v815 = vmul.f32 %v803, %v811
    %v816 = vmul.f32 %v804, %v812
    %v817 = vmul.f32 %v805, %v813
    %v818 = vmul.f32 %v806, %v814
    %v819 = vmul.f32 %v784, %v815
    %v820 = vmul.f32 %v786, %v816
    %v821 = vmul.f32 %v788, %v817
    %v822 = vmul.f32 %v790, %v818
    %v824 = vsel %vm766, %v819, 0
    %826 = vmatprep.subr.mxu0 0.0
    %827 = vmatpush1.msra.mxu0 %v407
    %828 = vmatprep.subr.mxu0 0.0
    %829 = vmatpush1.msra.mxu0 0.0
    %830 = vmatprep.subr.mxu0 0.0
    %831 = vmatpush1.msra.mxu0 0.0
    %832 = vmatprep.subr.mxu0 0.0
    %833 = vmatpush1.msra.mxu0 0.0
    %834 = vmatprep.subr.mxu0 0.0
    %835 = vmatpush1.msra.mxu0 0.0
    %836 = vmatprep.subr.mxu0 0.0
    %837 = vmatpush1.msra.mxu0 0.0
    %838 = vmatprep.subr.mxu0 0.0
    %839 = vmatpush1.msra.mxu0 0.0
    %840 = vmatprep.subr.mxu0 0.0
    %841 = vmatpush1.msra.mxu0 0.0
    %842 = vmatprep.subr.mxu0 0.0
    %843 = vmatpush1.msra.mxu0 0.0
    %844 = vmatprep.subr.mxu0 0.0
    %845 = vmatpush1.msra.mxu0 0.0
    %846 = vmatprep.subr.mxu0 0.0
    %847 = vmatpush1.msra.mxu0 0.0
    %848 = vmatprep.subr.mxu0 0.0
    %849 = vmatpush1.msra.mxu0 0.0
    %850 = vmatprep.subr.mxu0 0.0
    %851 = vmatpush1.msra.mxu0 0.0
    %852 = vmatprep.subr.mxu0 0.0
    %853 = vmatpush1.msra.mxu0 0.0
    %854 = vmatprep.subr.mxu0 0.0
    %855 = vmatpush1.msra.mxu0 0.0
    %856 = vmatprep.subr.mxu0 0.0
    %857 = vmatpush1.msra.mxu0 0.0
    %858 = vmatprep.subr.mxu0 0.0
    %859 = vmatpush1.msra.mxu0 0.0
    %860 = vmatprep.subr.mxu0 0.0
    %861 = vmatpush1.msra.mxu0 0.0
    %862 = vmatprep.subr.mxu0 0.0
    %863 = vmatpush1.msra.mxu0 0.0
    %864 = vmatprep.subr.mxu0 0.0
    %865 = vmatpush1.msra.mxu0 0.0
    %866 = vmatprep.subr.mxu0 0.0
    %867 = vmatpush1.msra.mxu0 0.0
    %868 = vmatprep.subr.mxu0 0.0
    %869 = vmatpush1.msra.mxu0 0.0
    %870 = vmatprep.subr.mxu0 0.0
    %871 = vmatpush1.msra.mxu0 0.0
    %872 = vmatprep.subr.mxu0 0.0
    %873 = vmatpush1.msra.mxu0 0.0
    %874 = vmatprep.subr.mxu0 0.0
    %875 = vmatpush1.msra.mxu0 0.0
    %876 = vmatprep.subr.mxu0 0.0
    %877 = vmatpush1.msra.mxu0 0.0
    %878 = vmatprep.subr.mxu0 0.0
    %879 = vmatpush1.msra.mxu0 0.0
    %880 = vmatprep.subr.mxu0 0.0
    %881 = vmatpush1.msra.mxu0 0.0
    %882 = vmatprep.subr.mxu0 0.0
    %883 = vmatpush1.msra.mxu0 0.0
    %884 = vmatprep.subr.mxu0 0.0
    %885 = vmatpush1.msra.mxu0 0.0
    %886 = vmatprep.subr.mxu0 0.0
    %887 = vmatpush1.msra.mxu0 0.0
    %888 = vmatprep.subr.mxu0 0.0
    %889 = vmatpush1.msra.mxu0 0.0
    %890 = vmatprep.mubr.f32.mxu0 0.0
    %891 = vmatmul.mubr.f32.gmra.mrb[0].mxu0 %v824
    %v892 = vpop.f32.mrb[0].mxu0
    %v893 = vadd.f32 0.0, %v892
    %v894 = vpop.f32.mrb[0].mxu0
    %895 = vdwg.mxu0
    %v897 = vsel %vm766, %v820, 0
    %899 = vmatprep.subr.mxu0 0.0
    %900 = vmatpush1.msra.mxu0 %v412
    %901 = vmatprep.subr.mxu0 0.0
    %902 = vmatpush1.msra.mxu0 0.0
    %903 = vmatprep.subr.mxu0 0.0
    %904 = vmatpush1.msra.mxu0 0.0
    %905 = vmatprep.subr.mxu0 0.0
    %906 = vmatpush1.msra.mxu0 0.0
    %907 = vmatprep.subr.mxu0 0.0
    %908 = vmatpush1.msra.mxu0 0.0
    %909 = vmatprep.subr.mxu0 0.0
    %910 = vmatpush1.msra.mxu0 0.0
    %911 = vmatprep.subr.mxu0 0.0
    %912 = vmatpush1.msra.mxu0 0.0
    %913 = vmatprep.subr.mxu0 0.0
    %914 = vmatpush1.msra.mxu0 0.0
    %915 = vmatprep.subr.mxu0 0.0
    %916 = vmatpush1.msra.mxu0 0.0
    %917 = vmatprep.subr.mxu0 0.0
    %918 = vmatpush1.msra.mxu0 0.0
    %919 = vmatprep.subr.mxu0 0.0
    %920 = vmatpush1.msra.mxu0 0.0
    %921 = vmatprep.subr.mxu0 0.0
    %922 = vmatpush1.msra.mxu0 0.0
    %923 = vmatprep.subr.mxu0 0.0
    %924 = vmatpush1.msra.mxu0 0.0
    %925 = vmatprep.subr.mxu0 0.0
    %926 = vmatpush1.msra.mxu0 0.0
    %927 = vmatprep.subr.mxu0 0.0
    %928 = vmatpush1.msra.mxu0 0.0
    %929 = vmatprep.subr.mxu0 0.0
    %930 = vmatpush1.msra.mxu0 0.0
    %931 = vmatprep.subr.mxu0 0.0
    %932 = vmatpush1.msra.mxu0 0.0
    %933 = vmatprep.subr.mxu0 0.0
    %934 = vmatpush1.msra.mxu0 0.0
    %935 = vmatprep.subr.mxu0 0.0
    %936 = vmatpush1.msra.mxu0 0.0
    %937 = vmatprep.subr.mxu0 0.0
    %938 = vmatpush1.msra.mxu0 0.0
    %939 = vmatprep.subr.mxu0 0.0
    %940 = vmatpush1.msra.mxu0 0.0
    %941 = vmatprep.subr.mxu0 0.0
    %942 = vmatpush1.msra.mxu0 0.0
    %943 = vmatprep.subr.mxu0 0.0
    %944 = vmatpush1.msra.mxu0 0.0
    %945 = vmatprep.subr.mxu0 0.0
    %946 = vmatpush1.msra.mxu0 0.0
    %947 = vmatprep.subr.mxu0 0.0
    %948 = vmatpush1.msra.mxu0 0.0
    %949 = vmatprep.subr.mxu0 0.0
    %950 = vmatpush1.msra.mxu0 0.0
    %951 = vmatprep.subr.mxu0 0.0
    %952 = vmatpush1.msra.mxu0 0.0
    %953 = vmatprep.subr.mxu0 0.0
    %954 = vmatpush1.msra.mxu0 0.0
    %955 = vmatprep.subr.mxu0 0.0
    %956 = vmatpush1.msra.mxu0 0.0
    %957 = vmatprep.subr.mxu0 0.0
    %958 = vmatpush1.msra.mxu0 0.0
    %959 = vmatprep.subr.mxu0 0.0
    %960 = vmatpush1.msra.mxu0 0.0
    %961 = vmatprep.subr.mxu0 0.0
    %962 = vmatpush1.msra.mxu0 0.0
    %963 = vmatprep.mubr.f32.mxu0 0.0
    %964 = vmatmul.mubr.f32.gmra.mrb[0].mxu0 %v897
    %v965 = vpop.f32.mrb[0].mxu0
    %v966 = vadd.f32 0.0, %v965
    %v967 = vpop.f32.mrb[0].mxu0
    %968 = vdwg.mxu0
    %v970 = vsel %vm766, %v821, 0
    %972 = vmatprep.subr.mxu0 0.0
    %973 = vmatpush1.msra.mxu0 %v417
    %974 = vmatprep.subr.mxu0 0.0
    %975 = vmatpush1.msra.mxu0 0.0
    %976 = vmatprep.subr.mxu0 0.0
    %977 = vmatpush1.msra.mxu0 0.0
    %978 = vmatprep.subr.mxu0 0.0
    %979 = vmatpush1.msra.mxu0 0.0
    %980 = vmatprep.subr.mxu0 0.0
    %981 = vmatpush1.msra.mxu0 0.0
    %982 = vmatprep.subr.mxu0 0.0
    %983 = vmatpush1.msra.mxu0 0.0
    %984 = vmatprep.subr.mxu0 0.0
    %985 = vmatpush1.msra.mxu0 0.0
    %986 = vmatprep.subr.mxu0 0.0
    %987 = vmatpush1.msra.mxu0 0.0
    %988 = vmatprep.subr.mxu0 0.0
    %989 = vmatpush1.msra.mxu0 0.0
    %990 = vmatprep.subr.mxu0 0.0
    %991 = vmatpush1.msra.mxu0 0.0
    %992 = vmatprep.subr.mxu0 0.0
    %993 = vmatpush1.msra.mxu0 0.0
    %994 = vmatprep.subr.mxu0 0.0
    %995 = vmatpush1.msra.mxu0 0.0
    %996 = vmatprep.subr.mxu0 0.0
    %997 = vmatpush1.msra.mxu0 0.0
    %998 = vmatprep.subr.mxu0 0.0
    %999 = vmatpush1.msra.mxu0 0.0
    %1000 = vmatprep.subr.mxu0 0.0
    %1001 = vmatpush1.msra.mxu0 0.0
    %1002 = vmatprep.subr.mxu0 0.0
    %1003 = vmatpush1.msra.mxu0 0.0
    %1004 = vmatprep.subr.mxu0 0.0
    %1005 = vmatpush1.msra.mxu0 0.0
    %1006 = vmatprep.subr.mxu0 0.0
    %1007 = vmatpush1.msra.mxu0 0.0
    %1008 = vmatprep.subr.mxu0 0.0
    %1009 = vmatpush1.msra.mxu0 0.0
    %1010 = vmatprep.subr.mxu0 0.0
    %1011 = vmatpush1.msra.mxu0 0.0
    %1012 = vmatprep.subr.mxu0 0.0
    %1013 = vmatpush1.msra.mxu0 0.0
    %1014 = vmatprep.subr.mxu0 0.0
    %1015 = vmatpush1.msra.mxu0 0.0
    %1016 = vmatprep.subr.mxu0 0.0
    %1017 = vmatpush1.msra.mxu0 0.0
    %1018 = vmatprep.subr.mxu0 0.0
    %1019 = vmatpush1.msra.mxu0 0.0
    %1020 = vmatprep.subr.mxu0 0.0
    %1021 = vmatpush1.msra.mxu0 0.0
    %1022 = vmatprep.subr.mxu0 0.0
    %1023 = vmatpush1.msra.mxu0 0.0
    %1024 = vmatprep.subr.mxu0 0.0
    %1025 = vmatpush1.msra.mxu0 0.0
    %1026 = vmatprep.subr.mxu0 0.0
    %1027 = vmatpush1.msra.mxu0 0.0
    %1028 = vmatprep.subr.mxu0 0.0
    %1029 = vmatpush1.msra.mxu0 0.0
    %1030 = vmatprep.subr.mxu0 0.0
    %1031 = vmatpush1.msra.mxu0 0.0
    %1032 = vmatprep.subr.mxu0 0.0
    %1033 = vmatpush1.msra.mxu0 0.0
    %1034 = vmatprep.subr.mxu0 0.0
    %1035 = vmatpush1.msra.mxu0 0.0
    %1036 = vmatprep.mubr.f32.mxu0 0.0
    %1037 = vmatmul.mubr.f32.gmra.mrb[0].mxu0 %v970
    %v1038 = vpop.f32.mrb[0].mxu0
    %v1039 = vadd.f32 0.0, %v1038
    %v1040 = vpop.f32.mrb[0].mxu0
    %1041 = vdwg.mxu0
    %v1043 = vsel %vm766, %v822, 0
    %1045 = vmatprep.subr.mxu0 0.0
    %1046 = vmatpush1.msra.mxu0 %v422
    %1047 = vmatprep.subr.mxu0 0.0
    %1048 = vmatpush1.msra.mxu0 0.0
    %1049 = vmatprep.subr.mxu0 0.0
    %1050 = vmatpush1.msra.mxu0 0.0
    %1051 = vmatprep.subr.mxu0 0.0
    %1052 = vmatpush1.msra.mxu0 0.0
    %1053 = vmatprep.subr.mxu0 0.0
    %1054 = vmatpush1.msra.mxu0 0.0
    %1055 = vmatprep.subr.mxu0 0.0
    %1056 = vmatpush1.msra.mxu0 0.0
    %1057 = vmatprep.subr.mxu0 0.0
    %1058 = vmatpush1.msra.mxu0 0.0
    %1059 = vmatprep.subr.mxu0 0.0
    %1060 = vmatpush1.msra.mxu0 0.0
    %1061 = vmatprep.subr.mxu0 0.0
    %1062 = vmatpush1.msra.mxu0 0.0
    %1063 = vmatprep.subr.mxu0 0.0
    %1064 = vmatpush1.msra.mxu0 0.0
    %1065 = vmatprep.subr.mxu0 0.0
    %1066 = vmatpush1.msra.mxu0 0.0
    %1067 = vmatprep.subr.mxu0 0.0
    %1068 = vmatpush1.msra.mxu0 0.0
    %1069 = vmatprep.subr.mxu0 0.0
    %1070 = vmatpush1.msra.mxu0 0.0
    %1071 = vmatprep.subr.mxu0 0.0
    %1072 = vmatpush1.msra.mxu0 0.0
    %1073 = vmatprep.subr.mxu0 0.0
    %1074 = vmatpush1.msra.mxu0 0.0
    %1075 = vmatprep.subr.mxu0 0.0
    %1076 = vmatpush1.msra.mxu0 0.0
    %1077 = vmatprep.subr.mxu0 0.0
    %1078 = vmatpush1.msra.mxu0 0.0
    %1079 = vmatprep.subr.mxu0 0.0
    %1080 = vmatpush1.msra.mxu0 0.0
    %1081 = vmatprep.subr.mxu0 0.0
    %1082 = vmatpush1.msra.mxu0 0.0
    %1083 = vmatprep.subr.mxu0 0.0
    %1084 = vmatpush1.msra.mxu0 0.0
    %1085 = vmatprep.subr.mxu0 0.0
    %1086 = vmatpush1.msra.mxu0 0.0
    %1087 = vmatprep.subr.mxu0 0.0
    %1088 = vmatpush1.msra.mxu0 0.0
    %1089 = vmatprep.subr.mxu0 0.0
    %1090 = vmatpush1.msra.mxu0 0.0
    %1091 = vmatprep.subr.mxu0 0.0
    %1092 = vmatpush1.msra.mxu0 0.0
    %1093 = vmatprep.subr.mxu0 0.0
    %1094 = vmatpush1.msra.mxu0 0.0
    %1095 = vmatprep.subr.mxu0 0.0
    %1096 = vmatpush1.msra.mxu0 0.0
    %1097 = vmatprep.subr.mxu0 0.0
    %1098 = vmatpush1.msra.mxu0 0.0
    %1099 = vmatprep.subr.mxu0 0.0
    %1100 = vmatpush1.msra.mxu0 0.0
    %1101 = vmatprep.subr.mxu0 0.0
    %1102 = vmatpush1.msra.mxu0 0.0
    %1103 = vmatprep.subr.mxu0 0.0
    %1104 = vmatpush1.msra.mxu0 0.0
    %1105 = vmatprep.subr.mxu0 0.0
    %1106 = vmatpush1.msra.mxu0 0.0
    %1107 = vmatprep.subr.mxu0 0.0
    %1108 = vmatpush1.msra.mxu0 0.0
    %1109 = vmatprep.mubr.f32.mxu0 0.0
    %1110 = vmatmul.mubr.f32.gmra.mrb[0].mxu0 %v1043
    %v1111 = vpop.f32.mrb[0].mxu0
    %v1112 = vadd.f32 0.0, %v1111
    %v1113 = vpop.f32.mrb[0].mxu0
    %1114 = vdwg.mxu0
    %1115 = vrot.lane.b32.xlu0 %v197, 112
    %v1116 = vpop.permute.xlu0 %1115
    %1117 = vrot.lane.b32.xlu0 %v302, 112
    %v1118 = vpop.permute.xlu0 %1117
    %v1119 = vsel %vm429, %v1116, 0
    %v1121 = vsel %vm429, %v1118, 0
    %1123 = vmatprep.subr.mxu0 0.0
    %1124 = vmatpush1.xpose.msra.mxu0 %v1121
    %1125 = vmatprep.subr.mxu0 0.0
    %1126 = vmatpush1.xpose.msra.mxu0 0.0
    %1127 = vmatprep.subr.mxu0 0.0
    %1128 = vmatpush1.xpose.msra.mxu0 0.0
    %1129 = vmatprep.subr.mxu0 0.0
    %1130 = vmatpush1.xpose.msra.mxu0 0.0
    %1131 = vmatprep.subr.mxu0 0.0
    %1132 = vmatpush1.xpose.msra.mxu0 0.0
    %1133 = vmatprep.subr.mxu0 0.0
    %1134 = vmatpush1.xpose.msra.mxu0 0.0
    %1135 = vmatprep.subr.mxu0 0.0
    %1136 = vmatpush1.xpose.msra.mxu0 0.0
    %1137 = vmatprep.subr.mxu0 0.0
    %1138 = vmatpush1.xpose.msra.mxu0 0.0
    %1139 = vmatprep.subr.mxu0 0.0
    %1140 = vmatpush1.xpose.msra.mxu0 0.0
    %1141 = vmatprep.subr.mxu0 0.0
    %1142 = vmatpush1.xpose.msra.mxu0 0.0
    %1143 = vmatprep.subr.mxu0 0.0
    %1144 = vmatpush1.xpose.msra.mxu0 0.0
    %1145 = vmatprep.subr.mxu0 0.0
    %1146 = vmatpush1.xpose.msra.mxu0 0.0
    %1147 = vmatprep.subr.mxu0 0.0
    %1148 = vmatpush1.xpose.msra.mxu0 0.0
    %1149 = vmatprep.subr.mxu0 0.0
    %1150 = vmatpush1.xpose.msra.mxu0 0.0
    %1151 = vmatprep.subr.mxu0 0.0
    %1152 = vmatpush1.xpose.msra.mxu0 0.0
    %1153 = vmatprep.subr.mxu0 0.0
    %1154 = vmatpush1.xpose.msra.mxu0 0.0
    %1155 = vmatprep.subr.mxu0 0.0
    %1156 = vmatpush1.xpose.msra.mxu0 0.0
    %1157 = vmatprep.subr.mxu0 0.0
    %1158 = vmatpush1.xpose.msra.mxu0 0.0
    %1159 = vmatprep.subr.mxu0 0.0
    %1160 = vmatpush1.xpose.msra.mxu0 0.0
    %1161 = vmatprep.subr.mxu0 0.0
    %1162 = vmatpush1.xpose.msra.mxu0 0.0
    %1163 = vmatprep.subr.mxu0 0.0
    %1164 = vmatpush1.xpose.msra.mxu0 0.0
    %1165 = vmatprep.subr.mxu0 0.0
    %1166 = vmatpush1.xpose.msra.mxu0 0.0
    %1167 = vmatprep.subr.mxu0 0.0
    %1168 = vmatpush1.xpose.msra.mxu0 0.0
    %1169 = vmatprep.subr.mxu0 0.0
    %1170 = vmatpush1.xpose.msra.mxu0 0.0
    %1171 = vmatprep.subr.mxu0 0.0
    %1172 = vmatpush1.xpose.msra.mxu0 0.0
    %1173 = vmatprep.subr.mxu0 0.0
    %1174 = vmatpush1.xpose.msra.mxu0 0.0
    %1175 = vmatprep.subr.mxu0 0.0
    %1176 = vmatpush1.xpose.msra.mxu0 0.0
    %1177 = vmatprep.subr.mxu0 0.0
    %1178 = vmatpush1.xpose.msra.mxu0 0.0
    %1179 = vmatprep.subr.mxu0 0.0
    %1180 = vmatpush1.xpose.msra.mxu0 0.0
    %1181 = vmatprep.subr.mxu0 0.0
    %1182 = vmatpush1.xpose.msra.mxu0 0.0
    %1183 = vmatprep.subr.mxu0 0.0
    %1184 = vmatpush1.xpose.msra.mxu0 0.0
    %1185 = vmatprep.subr.mxu0 0.0
    %1186 = vmatpush1.xpose.msra.mxu0 0.0
    %1187 = vmatprep.mubr.f32.mxu0 0.0
    %1188 = vmatmul.mubr.f32.gmra.mrb[0].mxu0 %v1119
    %v1189 = vpop.f32.mrb[0].mxu0
    %v1190 = vadd.f32 0.0, %v1189
    %v1191 = vpop.f32.mrb[0].mxu0
    %1192 = vdwg.mxu0
    %1193 = vrot.lane.b32.xlu0 %v202, 112
    %v1194 = vpop.permute.xlu0 %1193
    %1195 = vrot.lane.b32.xlu0 %v307, 112
    %v1196 = vpop.permute.xlu0 %1195
    %v1197 = vsel %vm429, %v1194, 0
    %v1199 = vsel %vm429, %v1196, 0
    %1201 = vmatprep.subr.mxu0 0.0
    %1202 = vmatpush1.xpose.msra.mxu0 %v1199
    %1203 = vmatprep.subr.mxu0 0.0
    %1204 = vmatpush1.xpose.msra.mxu0 0.0
    %1205 = vmatprep.subr.mxu0 0.0
    %1206 = vmatpush1.xpose.msra.mxu0 0.0
    %1207 = vmatprep.subr.mxu0 0.0
    %1208 = vmatpush1.xpose.msra.mxu0 0.0
    %1209 = vmatprep.subr.mxu0 0.0
    %1210 = vmatpush1.xpose.msra.mxu0 0.0
    %1211 = vmatprep.subr.mxu0 0.0
    %1212 = vmatpush1.xpose.msra.mxu0 0.0
    %1213 = vmatprep.subr.mxu0 0.0
    %1214 = vmatpush1.xpose.msra.mxu0 0.0
    %1215 = vmatprep.subr.mxu0 0.0
    %1216 = vmatpush1.xpose.msra.mxu0 0.0
    %1217 = vmatprep.subr.mxu0 0.0
    %1218 = vmatpush1.xpose.msra.mxu0 0.0
    %1219 = vmatprep.subr.mxu0 0.0
    %1220 = vmatpush1.xpose.msra.mxu0 0.0
    %1221 = vmatprep.subr.mxu0 0.0
    %1222 = vmatpush1.xpose.msra.mxu0 0.0
    %1223 = vmatprep.subr.mxu0 0.0
    %1224 = vmatpush1.xpose.msra.mxu0 0.0
    %1225 = vmatprep.subr.mxu0 0.0
    %1226 = vmatpush1.xpose.msra.mxu0 0.0
    %1227 = vmatprep.subr.mxu0 0.0
    %1228 = vmatpush1.xpose.msra.mxu0 0.0
    %1229 = vmatprep.subr.mxu0 0.0
    %1230 = vmatpush1.xpose.msra.mxu0 0.0
    %1231 = vmatprep.subr.mxu0 0.0
    %1232 = vmatpush1.xpose.msra.mxu0 0.0
    %1233 = vmatprep.subr.mxu0 0.0
    %1234 = vmatpush1.xpose.msra.mxu0 0.0
    %1235 = vmatprep.subr.mxu0 0.0
    %1236 = vmatpush1.xpose.msra.mxu0 0.0
    %1237 = vmatprep.subr.mxu0 0.0
    %1238 = vmatpush1.xpose.msra.mxu0 0.0
    %1239 = vmatprep.subr.mxu0 0.0
    %1240 = vmatpush1.xpose.msra.mxu0 0.0
    %1241 = vmatprep.subr.mxu0 0.0
    %1242 = vmatpush1.xpose.msra.mxu0 0.0
    %1243 = vmatprep.subr.mxu0 0.0
    %1244 = vmatpush1.xpose.msra.mxu0 0.0
    %1245 = vmatprep.subr.mxu0 0.0
    %1246 = vmatpush1.xpose.msra.mxu0 0.0
    %1247 = vmatprep.subr.mxu0 0.0
    %1248 = vmatpush1.xpose.msra.mxu0 0.0
    %1249 = vmatprep.subr.mxu0 0.0
    %1250 = vmatpush1.xpose.msra.mxu0 0.0
    %1251 = vmatprep.subr.mxu0 0.0
    %1252 = vmatpush1.xpose.msra.mxu0 0.0
    %1253 = vmatprep.subr.mxu0 0.0
    %1254 = vmatpush1.xpose.msra.mxu0 0.0
    %1255 = vmatprep.subr.mxu0 0.0
    %1256 = vmatpush1.xpose.msra.mxu0 0.0
    %1257 = vmatprep.subr.mxu0 0.0
    %1258 = vmatpush1.xpose.msra.mxu0 0.0
    %1259 = vmatprep.subr.mxu0 0.0
    %1260 = vmatpush1.xpose.msra.mxu0 0.0
    %1261 = vmatprep.subr.mxu0 0.0
    %1262 = vmatpush1.xpose.msra.mxu0 0.0
    %1263 = vmatprep.subr.mxu0 0.0
    %1264 = vmatpush1.xpose.msra.mxu0 0.0
    %1265 = vmatprep.mubr.f32.mxu0 0.0
    %1266 = vmatmul.mubr.f32.gmra.mrb[0].mxu0 %v1197
    %v1267 = vpop.f32.mrb[0].mxu0
    %v1268 = vadd.f32 0.0, %v1267
    %v1269 = vpop.f32.mrb[0].mxu0
    %1270 = vdwg.mxu0
    %1271 = vrot.lane.b32.xlu0 %v207, 112
    %v1272 = vpop.permute.xlu0 %1271
    %1273 = vrot.lane.b32.xlu0 %v312, 112
    %v1274 = vpop.permute.xlu0 %1273
    %v1275 = vsel %vm429, %v1272, 0
    %v1277 = vsel %vm429, %v1274, 0
    %1279 = vmatprep.subr.mxu0 0.0
    %1280 = vmatpush1.xpose.msra.mxu0 %v1277
    %1281 = vmatprep.subr.mxu0 0.0
    %1282 = vmatpush1.xpose.msra.mxu0 0.0
    %1283 = vmatprep.subr.mxu0 0.0
    %1284 = vmatpush1.xpose.msra.mxu0 0.0
    %1285 = vmatprep.subr.mxu0 0.0
    %1286 = vmatpush1.xpose.msra.mxu0 0.0
    %1287 = vmatprep.subr.mxu0 0.0
    %1288 = vmatpush1.xpose.msra.mxu0 0.0
    %1289 = vmatprep.subr.mxu0 0.0
    %1290 = vmatpush1.xpose.msra.mxu0 0.0
    %1291 = vmatprep.subr.mxu0 0.0
    %1292 = vmatpush1.xpose.msra.mxu0 0.0
    %1293 = vmatprep.subr.mxu0 0.0
    %1294 = vmatpush1.xpose.msra.mxu0 0.0
    %1295 = vmatprep.subr.mxu0 0.0
    %1296 = vmatpush1.xpose.msra.mxu0 0.0
    %1297 = vmatprep.subr.mxu0 0.0
    %1298 = vmatpush1.xpose.msra.mxu0 0.0
    %1299 = vmatprep.subr.mxu0 0.0
    %1300 = vmatpush1.xpose.msra.mxu0 0.0
    %1301 = vmatprep.subr.mxu0 0.0
    %1302 = vmatpush1.xpose.msra.mxu0 0.0
    %1303 = vmatprep.subr.mxu0 0.0
    %1304 = vmatpush1.xpose.msra.mxu0 0.0
    %1305 = vmatprep.subr.mxu0 0.0
    %1306 = vmatpush1.xpose.msra.mxu0 0.0
    %1307 = vmatprep.subr.mxu0 0.0
    %1308 = vmatpush1.xpose.msra.mxu0 0.0
    %1309 = vmatprep.subr.mxu0 0.0
    %1310 = vmatpush1.xpose.msra.mxu0 0.0
    %1311 = vmatprep.subr.mxu0 0.0
    %1312 = vmatpush1.xpose.msra.mxu0 0.0
    %1313 = vmatprep.subr.mxu0 0.0
    %1314 = vmatpush1.xpose.msra.mxu0 0.0
    %1315 = vmatprep.subr.mxu0 0.0
    %1316 = vmatpush1.xpose.msra.mxu0 0.0
    %1317 = vmatprep.subr.mxu0 0.0
    %1318 = vmatpush1.xpose.msra.mxu0 0.0
    %1319 = vmatprep.subr.mxu0 0.0
    %1320 = vmatpush1.xpose.msra.mxu0 0.0
    %1321 = vmatprep.subr.mxu0 0.0
    %1322 = vmatpush1.xpose.msra.mxu0 0.0
    %1323 = vmatprep.subr.mxu0 0.0
    %1324 = vmatpush1.xpose.msra.mxu0 0.0
    %1325 = vmatprep.subr.mxu0 0.0
    %1326 = vmatpush1.xpose.msra.mxu0 0.0
    %1327 = vmatprep.subr.mxu0 0.0
    %1328 = vmatpush1.xpose.msra.mxu0 0.0
    %1329 = vmatprep.subr.mxu0 0.0
    %1330 = vmatpush1.xpose.msra.mxu0 0.0
    %1331 = vmatprep.subr.mxu0 0.0
    %1332 = vmatpush1.xpose.msra.mxu0 0.0
    %1333 = vmatprep.subr.mxu0 0.0
    %1334 = vmatpush1.xpose.msra.mxu0 0.0
    %1335 = vmatprep.subr.mxu0 0.0
    %1336 = vmatpush1.xpose.msra.mxu0 0.0
    %1337 = vmatprep.subr.mxu0 0.0
    %1338 = vmatpush1.xpose.msra.mxu0 0.0
    %1339 = vmatprep.subr.mxu0 0.0
    %1340 = vmatpush1.xpose.msra.mxu0 0.0
    %1341 = vmatprep.subr.mxu0 0.0
    %1342 = vmatpush1.xpose.msra.mxu0 0.0
    %1343 = vmatprep.mubr.f32.mxu0 0.0
    %1344 = vmatmul.mubr.f32.gmra.mrb[0].mxu0 %v1275
    %v1345 = vpop.f32.mrb[0].mxu0
    %v1346 = vadd.f32 0.0, %v1345
    %v1347 = vpop.f32.mrb[0].mxu0
    %1348 = vdwg.mxu0
    %1349 = vrot.lane.b32.xlu0 %v212, 112
    %v1350 = vpop.permute.xlu0 %1349
    %1351 = vrot.lane.b32.xlu0 %v317, 112
    %v1352 = vpop.permute.xlu0 %1351
    %v1353 = vsel %vm429, %v1350, 0
    %v1355 = vsel %vm429, %v1352, 0
    %1357 = vmatprep.subr.mxu0 0.0
    %1358 = vmatpush1.xpose.msra.mxu0 %v1355
    %1359 = vmatprep.subr.mxu0 0.0
    %1360 = vmatpush1.xpose.msra.mxu0 0.0
    %1361 = vmatprep.subr.mxu0 0.0
    %1362 = vmatpush1.xpose.msra.mxu0 0.0
    %1363 = vmatprep.subr.mxu0 0.0
    %1364 = vmatpush1.xpose.msra.mxu0 0.0
    %1365 = vmatprep.subr.mxu0 0.0
    %1366 = vmatpush1.xpose.msra.mxu0 0.0
    %1367 = vmatprep.subr.mxu0 0.0
    %1368 = vmatpush1.xpose.msra.mxu0 0.0
    %1369 = vmatprep.subr.mxu0 0.0
    %1370 = vmatpush1.xpose.msra.mxu0 0.0
    %1371 = vmatprep.subr.mxu0 0.0
    %1372 = vmatpush1.xpose.msra.mxu0 0.0
    %1373 = vmatprep.subr.mxu0 0.0
    %1374 = vmatpush1.xpose.msra.mxu0 0.0
    %1375 = vmatprep.subr.mxu0 0.0
    %1376 = vmatpush1.xpose.msra.mxu0 0.0
    %1377 = vmatprep.subr.mxu0 0.0
    %1378 = vmatpush1.xpose.msra.mxu0 0.0
    %1379 = vmatprep.subr.mxu0 0.0
    %1380 = vmatpush1.xpose.msra.mxu0 0.0
    %1381 = vmatprep.subr.mxu0 0.0
    %1382 = vmatpush1.xpose.msra.mxu0 0.0
    %1383 = vmatprep.subr.mxu0 0.0
    %1384 = vmatpush1.xpose.msra.mxu0 0.0
    %1385 = vmatprep.subr.mxu0 0.0
    %1386 = vmatpush1.xpose.msra.mxu0 0.0
    %1387 = vmatprep.subr.mxu0 0.0
    %1388 = vmatpush1.xpose.msra.mxu0 0.0
    %1389 = vmatprep.subr.mxu0 0.0
    %1390 = vmatpush1.xpose.msra.mxu0 0.0
    %1391 = vmatprep.subr.mxu0 0.0
    %1392 = vmatpush1.xpose.msra.mxu0 0.0
    %1393 = vmatprep.subr.mxu0 0.0
    %1394 = vmatpush1.xpose.msra.mxu0 0.0
    %1395 = vmatprep.subr.mxu0 0.0
    %1396 = vmatpush1.xpose.msra.mxu0 0.0
    %1397 = vmatprep.subr.mxu0 0.0
    %1398 = vmatpush1.xpose.msra.mxu0 0.0
    %1399 = vmatprep.subr.mxu0 0.0
    %1400 = vmatpush1.xpose.msra.mxu0 0.0
    %1401 = vmatprep.subr.mxu0 0.0
    %1402 = vmatpush1.xpose.msra.mxu0 0.0
    %1403 = vmatprep.subr.mxu0 0.0
    %1404 = vmatpush1.xpose.msra.mxu0 0.0
    %1405 = vmatprep.subr.mxu0 0.0
    %1406 = vmatpush1.xpose.msra.mxu0 0.0
    %1407 = vmatprep.subr.mxu0 0.0
    %1408 = vmatpush1.xpose.msra.mxu0 0.0
    %1409 = vmatprep.subr.mxu0 0.0
    %1410 = vmatpush1.xpose.msra.mxu0 0.0
    %1411 = vmatprep.subr.mxu0 0.0
    %1412 = vmatpush1.xpose.msra.mxu0 0.0
    %1413 = vmatprep.subr.mxu0 0.0
    %1414 = vmatpush1.xpose.msra.mxu0 0.0
    %1415 = vmatprep.subr.mxu0 0.0
    %1416 = vmatpush1.xpose.msra.mxu0 0.0
    %1417 = vmatprep.subr.mxu0 0.0
    %1418 = vmatpush1.xpose.msra.mxu0 0.0
    %1419 = vmatprep.subr.mxu0 0.0
    %1420 = vmatpush1.xpose.msra.mxu0 0.0
    %1421 = vmatprep.mubr.f32.mxu0 0.0
    %1422 = vmatmul.mubr.f32.gmra.mrb[0].mxu0 %v1353
    %v1423 = vpop.f32.mrb[0].mxu0
    %v1424 = vadd.f32 0.0, %v1423
    %v1425 = vpop.f32.mrb[0].mxu0
    %1426 = vdwg.mxu0
    %v1427 = vmul.f32 %v1190, 0.25
    %v1428 = vmul.f32 %v1268, 0.25
    %v1429 = vmul.f32 %v1346, 0.25
    %v1430 = vmul.f32 %v1424, 0.25
    %v1431 = vadd.f32 %v1427, %v745
    %v1432 = vadd.f32 %v1428, %v749
    %v1433 = vadd.f32 %v1429, %v753
    %v1434 = vadd.f32 %v1430, %v757
    %v1435 = vsel %vm766, %v1431, -inf
    %1436 = vmax.xlane.f32.xlu0 %v1435
    %v1437 = vpop.xlane.xlu0 %1436
    %v1438 = vsel %vm766, %v1432, -inf
    %1439 = vmax.xlane.f32.xlu0 %v1438
    %v1440 = vpop.xlane.xlu0 %1439
    %v1441 = vsel %vm766, %v1433, -inf
    %1442 = vmax.xlane.f32.xlu0 %v1441
    %v1443 = vpop.xlane.xlu0 %1442
    %v1444 = vsel %vm766, %v1434, -inf
    %1445 = vmax.xlane.f32.xlu0 %v1444
    %v1446 = vpop.xlane.xlu0 %1445
    %v1447 = vsub.f32 %v1431, %v1437
    %v1448 = vsub.f32 %v1432, %v1440
    %v1449 = vsub.f32 %v1433, %v1443
    %v1450 = vsub.f32 %v1434, %v1446
    %v1451 = vmul.f32 %v1447, 1.442695
    %v1452 = vpow.pop %v1451
    %v1453 = vmul.f32 %v1448, 1.442695
    %v1454 = vpow.pop %v1453
    %v1455 = vmul.f32 %v1449, 1.442695
    %v1456 = vpow.pop %v1455
    %v1457 = vmul.f32 %v1450, 1.442695
    %v1458 = vpow.pop %v1457
    %v1459 = vsel %vm766, %v1452, 0.0
    %1460 = vadd.xlane.f32.xlu0 %v1459
    %v1461 = vpop.xlane.xlu0 %1460
    %v1462 = vsel %vm766, %v1454, 0.0
    %1463 = vadd.xlane.f32.xlu0 %v1462
    %v1464 = vpop.xlane.xlu0 %1463
    %v1465 = vsel %vm766, %v1456, 0.0
    %1466 = vadd.xlane.f32.xlu0 %v1465
    %v1467 = vpop.xlane.xlu0 %1466
    %v1468 = vsel %vm766, %v1458, 0.0
    %1469 = vadd.xlane.f32.xlu0 %v1468
    %v1470 = vpop.xlane.xlu0 %1469
    %v1471 = vrcp.pop %v1461
    %v1472 = vrcp.pop %v1464
    %v1473 = vrcp.pop %v1467
    %v1474 = vrcp.pop %v1470
    %v1475 = vmul.f32 %v1461, %v1471
    %v1476 = vmul.f32 %v1464, %v1472
    %v1477 = vmul.f32 %v1467, %v1473
    %v1478 = vmul.f32 %v1470, %v1474
    %v1479 = vsub.f32 2.0, %v1475
    %v1480 = vsub.f32 2.0, %v1476
    %v1481 = vsub.f32 2.0, %v1477
    %v1482 = vsub.f32 2.0, %v1478
    %v1483 = vmul.f32 %v1471, %v1479
    %v1484 = vmul.f32 %v1472, %v1480
    %v1485 = vmul.f32 %v1473, %v1481
    %v1486 = vmul.f32 %v1474, %v1482
    %v1487 = vmul.f32 %v1452, %v1483
    %v1488 = vmul.f32 %v1454, %v1484
    %v1489 = vmul.f32 %v1456, %v1485
    %v1490 = vmul.f32 %v1458, %v1486
    %1492 = vrot.lane.b32.xlu0 %v407, 112
    %v1493 = vpop.permute.xlu0 %1492
    %v1496 = vsel %vm766, %v1487, 0
    %1498 = vmatprep.subr.mxu0 0.0
    %1499 = vmatpush1.msra.mxu0 %v1493
    %1500 = vmatprep.subr.mxu0 0.0
    %1501 = vmatpush1.msra.mxu0 0.0
    %1502 = vmatprep.subr.mxu0 0.0
    %1503 = vmatpush1.msra.mxu0 0.0
    %1504 = vmatprep.subr.mxu0 0.0
    %1505 = vmatpush1.msra.mxu0 0.0
    %1506 = vmatprep.subr.mxu0 0.0
    %1507 = vmatpush1.msra.mxu0 0.0
    %1508 = vmatprep.subr.mxu0 0.0
    %1509 = vmatpush1.msra.mxu0 0.0
    %1510 = vmatprep.subr.mxu0 0.0
    %1511 = vmatpush1.msra.mxu0 0.0
    %1512 = vmatprep.subr.mxu0 0.0
    %1513 = vmatpush1.msra.mxu0 0.0
    %1514 = vmatprep.subr.mxu0 0.0
    %1515 = vmatpush1.msra.mxu0 0.0
    %1516 = vmatprep.subr.mxu0 0.0
    %1517 = vmatpush1.msra.mxu0 0.0
    %1518 = vmatprep.subr.mxu0 0.0
    %1519 = vmatpush1.msra.mxu0 0.0
    %1520 = vmatprep.subr.mxu0 0.0
    %1521 = vmatpush1.msra.mxu0 0.0
    %1522 = vmatprep.subr.mxu0 0.0
    %1523 = vmatpush1.msra.mxu0 0.0
    %1524 = vmatprep.subr.mxu0 0.0
    %1525 = vmatpush1.msra.mxu0 0.0
    %1526 = vmatprep.subr.mxu0 0.0
    %1527 = vmatpush1.msra.mxu0 0.0
    %1528 = vmatprep.subr.mxu0 0.0
    %1529 = vmatpush1.msra.mxu0 0.0
    %1530 = vmatprep.subr.mxu0 0.0
    %1531 = vmatpush1.msra.mxu0 0.0
    %1532 = vmatprep.subr.mxu0 0.0
    %1533 = vmatpush1.msra.mxu0 0.0
    %1534 = vmatprep.subr.mxu0 0.0
    %1535 = vmatpush1.msra.mxu0 0.0
    %1536 = vmatprep.subr.mxu0 0.0
    %1537 = vmatpush1.msra.mxu0 0.0
    %1538 = vmatprep.subr.mxu0 0.0
    %1539 = vmatpush1.msra.mxu0 0.0
    %1540 = vmatprep.subr.mxu0 0.0
    %1541 = vmatpush1.msra.mxu0 0.0
    %1542 = vmatprep.subr.mxu0 0.0
    %1543 = vmatpush1.msra.mxu0 0.0
    %1544 = vmatprep.subr.mxu0 0.0
    %1545 = vmatpush1.msra.mxu0 0.0
    %1546 = vmatprep.subr.mxu0 0.0
    %1547 = vmatpush1.msra.mxu0 0.0
    %1548 = vmatprep.subr.mxu0 0.0
    %1549 = vmatpush1.msra.mxu0 0.0
    %1550 = vmatprep.subr.mxu0 0.0
    %1551 = vmatpush1.msra.mxu0 0.0
    %1552 = vmatprep.subr.mxu0 0.0
    %1553 = vmatpush1.msra.mxu0 0.0
    %1554 = vmatprep.subr.mxu0 0.0
    %1555 = vmatpush1.msra.mxu0 0.0
    %1556 = vmatprep.subr.mxu0 0.0
    %1557 = vmatpush1.msra.mxu0 0.0
    %1558 = vmatprep.subr.mxu0 0.0
    %1559 = vmatpush1.msra.mxu0 0.0
    %1560 = vmatprep.subr.mxu0 0.0
    %1561 = vmatpush1.msra.mxu0 0.0
    %1562 = vmatprep.mubr.f32.mxu0 0.0
    %1563 = vmatmul.mubr.f32.gmra.mrb[0].mxu0 %v1496
    %v1564 = vpop.f32.mrb[0].mxu0
    %v1565 = vadd.f32 0.0, %v1564
    %v1566 = vpop.f32.mrb[0].mxu0
    %1567 = vdwg.mxu0
    %1569 = vrot.lane.b32.xlu0 %v412, 112
    %v1570 = vpop.permute.xlu0 %1569
    %v1573 = vsel %vm766, %v1488, 0
    %1575 = vmatprep.subr.mxu0 0.0
    %1576 = vmatpush1.msra.mxu0 %v1570
    %1577 = vmatprep.subr.mxu0 0.0
    %1578 = vmatpush1.msra.mxu0 0.0
    %1579 = vmatprep.subr.mxu0 0.0
    %1580 = vmatpush1.msra.mxu0 0.0
    %1581 = vmatprep.subr.mxu0 0.0
    %1582 = vmatpush1.msra.mxu0 0.0
    %1583 = vmatprep.subr.mxu0 0.0
    %1584 = vmatpush1.msra.mxu0 0.0
    %1585 = vmatprep.subr.mxu0 0.0
    %1586 = vmatpush1.msra.mxu0 0.0
    %1587 = vmatprep.subr.mxu0 0.0
    %1588 = vmatpush1.msra.mxu0 0.0
    %1589 = vmatprep.subr.mxu0 0.0
    %1590 = vmatpush1.msra.mxu0 0.0
    %1591 = vmatprep.subr.mxu0 0.0
    %1592 = vmatpush1.msra.mxu0 0.0
    %1593 = vmatprep.subr.mxu0 0.0
    %1594 = vmatpush1.msra.mxu0 0.0
    %1595 = vmatprep.subr.mxu0 0.0
    %1596 = vmatpush1.msra.mxu0 0.0
    %1597 = vmatprep.subr.mxu0 0.0
    %1598 = vmatpush1.msra.mxu0 0.0
    %1599 = vmatprep.subr.mxu0 0.0
    %1600 = vmatpush1.msra.mxu0 0.0
    %1601 = vmatprep.subr.mxu0 0.0
    %1602 = vmatpush1.msra.mxu0 0.0
    %1603 = vmatprep.subr.mxu0 0.0
    %1604 = vmatpush1.msra.mxu0 0.0
    %1605 = vmatprep.subr.mxu0 0.0
    %1606 = vmatpush1.msra.mxu0 0.0
    %1607 = vmatprep.subr.mxu0 0.0
    %1608 = vmatpush1.msra.mxu0 0.0
    %1609 = vmatprep.subr.mxu0 0.0
    %1610 = vmatpush1.msra.mxu0 0.0
    %1611 = vmatprep.subr.mxu0 0.0
    %1612 = vmatpush1.msra.mxu0 0.0
    %1613 = vmatprep.subr.mxu0 0.0
    %1614 = vmatpush1.msra.mxu0 0.0
    %1615 = vmatprep.subr.mxu0 0.0
    %1616 = vmatpush1.msra.mxu0 0.0
    %1617 = vmatprep.subr.mxu0 0.0
    %1618 = vmatpush1.msra.mxu0 0.0
    %1619 = vmatprep.subr.mxu0 0.0
    %1620 = vmatpush1.msra.mxu0 0.0
    %1621 = vmatprep.subr.mxu0 0.0
    %1622 = vmatpush1.msra.mxu0 0.0
    %1623 = vmatprep.subr.mxu0 0.0
    %1624 = vmatpush1.msra.mxu0 0.0
    %1625 = vmatprep.subr.mxu0 0.0
    %1626 = vmatpush1.msra.mxu0 0.0
    %1627 = vmatprep.subr.mxu0 0.0
    %1628 = vmatpush1.msra.mxu0 0.0
    %1629 = vmatprep.subr.mxu0 0.0
    %1630 = vmatpush1.msra.mxu0 0.0
    %1631 = vmatprep.subr.mxu0 0.0
    %1632 = vmatpush1.msra.mxu0 0.0
    %1633 = vmatprep.subr.mxu0 0.0
    %1634 = vmatpush1.msra.mxu0 0.0
    %1635 = vmatprep.subr.mxu0 0.0
    %1636 = vmatpush1.msra.mxu0 0.0
    %1637 = vmatprep.subr.mxu0 0.0
    %1638 = vmatpush1.msra.mxu0 0.0
    %1639 = vmatprep.mubr.f32.mxu0 0.0
    %1640 = vmatmul.mubr.f32.gmra.mrb[0].mxu0 %v1573
    %v1641 = vpop.f32.mrb[0].mxu0
    %v1642 = vadd.f32 0.0, %v1641
    %v1643 = vpop.f32.mrb[0].mxu0
    %1644 = vdwg.mxu0
    %1646 = vrot.lane.b32.xlu0 %v417, 112
    %v1647 = vpop.permute.xlu0 %1646
    %v1650 = vsel %vm766, %v1489, 0
    %1652 = vmatprep.subr.mxu0 0.0
    %1653 = vmatpush1.msra.mxu0 %v1647
    %1654 = vmatprep.subr.mxu0 0.0
    %1655 = vmatpush1.msra.mxu0 0.0
    %1656 = vmatprep.subr.mxu0 0.0
    %1657 = vmatpush1.msra.mxu0 0.0
    %1658 = vmatprep.subr.mxu0 0.0
    %1659 = vmatpush1.msra.mxu0 0.0
    %1660 = vmatprep.subr.mxu0 0.0
    %1661 = vmatpush1.msra.mxu0 0.0
    %1662 = vmatprep.subr.mxu0 0.0
    %1663 = vmatpush1.msra.mxu0 0.0
    %1664 = vmatprep.subr.mxu0 0.0
    %1665 = vmatpush1.msra.mxu0 0.0
    %1666 = vmatprep.subr.mxu0 0.0
    %1667 = vmatpush1.msra.mxu0 0.0
    %1668 = vmatprep.subr.mxu0 0.0
    %1669 = vmatpush1.msra.mxu0 0.0
    %1670 = vmatprep.subr.mxu0 0.0
    %1671 = vmatpush1.msra.mxu0 0.0
    %1672 = vmatprep.subr.mxu0 0.0
    %1673 = vmatpush1.msra.mxu0 0.0
    %1674 = vmatprep.subr.mxu0 0.0
    %1675 = vmatpush1.msra.mxu0 0.0
    %1676 = vmatprep.subr.mxu0 0.0
    %1677 = vmatpush1.msra.mxu0 0.0
    %1678 = vmatprep.subr.mxu0 0.0
    %1679 = vmatpush1.msra.mxu0 0.0
    %1680 = vmatprep.subr.mxu0 0.0
    %1681 = vmatpush1.msra.mxu0 0.0
    %1682 = vmatprep.subr.mxu0 0.0
    %1683 = vmatpush1.msra.mxu0 0.0
    %1684 = vmatprep.subr.mxu0 0.0
    %1685 = vmatpush1.msra.mxu0 0.0
    %1686 = vmatprep.subr.mxu0 0.0
    %1687 = vmatpush1.msra.mxu0 0.0
    %1688 = vmatprep.subr.mxu0 0.0
    %1689 = vmatpush1.msra.mxu0 0.0
    %1690 = vmatprep.subr.mxu0 0.0
    %1691 = vmatpush1.msra.mxu0 0.0
    %1692 = vmatprep.subr.mxu0 0.0
    %1693 = vmatpush1.msra.mxu0 0.0
    %1694 = vmatprep.subr.mxu0 0.0
    %1695 = vmatpush1.msra.mxu0 0.0
    %1696 = vmatprep.subr.mxu0 0.0
    %1697 = vmatpush1.msra.mxu0 0.0
    %1698 = vmatprep.subr.mxu0 0.0
    %1699 = vmatpush1.msra.mxu0 0.0
    %1700 = vmatprep.subr.mxu0 0.0
    %1701 = vmatpush1.msra.mxu0 0.0
    %1702 = vmatprep.subr.mxu0 0.0
    %1703 = vmatpush1.msra.mxu0 0.0
    %1704 = vmatprep.subr.mxu0 0.0
    %1705 = vmatpush1.msra.mxu0 0.0
    %1706 = vmatprep.subr.mxu0 0.0
    %1707 = vmatpush1.msra.mxu0 0.0
    %1708 = vmatprep.subr.mxu0 0.0
    %1709 = vmatpush1.msra.mxu0 0.0
    %1710 = vmatprep.subr.mxu0 0.0
    %1711 = vmatpush1.msra.mxu0 0.0
    %1712 = vmatprep.subr.mxu0 0.0
    %1713 = vmatpush1.msra.mxu0 0.0
    %1714 = vmatprep.subr.mxu0 0.0
    %1715 = vmatpush1.msra.mxu0 0.0
    %1716 = vmatprep.mubr.f32.mxu0 0.0
    %1717 = vmatmul.mubr.f32.gmra.mrb[0].mxu0 %v1650
    %v1718 = vpop.f32.mrb[0].mxu0
    %v1719 = vadd.f32 0.0, %v1718
    %v1720 = vpop.f32.mrb[0].mxu0
    %1721 = vdwg.mxu0
    %1723 = vrot.lane.b32.xlu0 %v422, 112
    %v1724 = vpop.permute.xlu0 %1723
    %v1727 = vsel %vm766, %v1490, 0
    %1729 = vmatprep.subr.mxu0 0.0
    %1730 = vmatpush1.msra.mxu0 %v1724
    %1731 = vmatprep.subr.mxu0 0.0
    %1732 = vmatpush1.msra.mxu0 0.0
    %1733 = vmatprep.subr.mxu0 0.0
    %1734 = vmatpush1.msra.mxu0 0.0
    %1735 = vmatprep.subr.mxu0 0.0
    %1736 = vmatpush1.msra.mxu0 0.0
    %1737 = vmatprep.subr.mxu0 0.0
    %1738 = vmatpush1.msra.mxu0 0.0
    %1739 = vmatprep.subr.mxu0 0.0
    %1740 = vmatpush1.msra.mxu0 0.0
    %1741 = vmatprep.subr.mxu0 0.0
    %1742 = vmatpush1.msra.mxu0 0.0
    %1743 = vmatprep.subr.mxu0 0.0
    %1744 = vmatpush1.msra.mxu0 0.0
    %1745 = vmatprep.subr.mxu0 0.0
    %1746 = vmatpush1.msra.mxu0 0.0
    %1747 = vmatprep.subr.mxu0 0.0
    %1748 = vmatpush1.msra.mxu0 0.0
    %1749 = vmatprep.subr.mxu0 0.0
    %1750 = vmatpush1.msra.mxu0 0.0
    %1751 = vmatprep.subr.mxu0 0.0
    %1752 = vmatpush1.msra.mxu0 0.0
    %1753 = vmatprep.subr.mxu0 0.0
    %1754 = vmatpush1.msra.mxu0 0.0
    %1755 = vmatprep.subr.mxu0 0.0
    %1756 = vmatpush1.msra.mxu0 0.0
    %1757 = vmatprep.subr.mxu0 0.0
    %1758 = vmatpush1.msra.mxu0 0.0
    %1759 = vmatprep.subr.mxu0 0.0
    %1760 = vmatpush1.msra.mxu0 0.0
    %1761 = vmatprep.subr.mxu0 0.0
    %1762 = vmatpush1.msra.mxu0 0.0
    %1763 = vmatprep.subr.mxu0 0.0
    %1764 = vmatpush1.msra.mxu0 0.0
    %1765 = vmatprep.subr.mxu0 0.0
    %1766 = vmatpush1.msra.mxu0 0.0
    %1767 = vmatprep.subr.mxu0 0.0
    %1768 = vmatpush1.msra.mxu0 0.0
    %1769 = vmatprep.subr.mxu0 0.0
    %1770 = vmatpush1.msra.mxu0 0.0
    %1771 = vmatprep.subr.mxu0 0.0
    %1772 = vmatpush1.msra.mxu0 0.0
    %1773 = vmatprep.subr.mxu0 0.0
    %1774 = vmatpush1.msra.mxu0 0.0
    %1775 = vmatprep.subr.mxu0 0.0
    %1776 = vmatpush1.msra.mxu0 0.0
    %1777 = vmatprep.subr.mxu0 0.0
    %1778 = vmatpush1.msra.mxu0 0.0
    %1779 = vmatprep.subr.mxu0 0.0
    %1780 = vmatpush1.msra.mxu0 0.0
    %1781 = vmatprep.subr.mxu0 0.0
    %1782 = vmatpush1.msra.mxu0 0.0
    %1783 = vmatprep.subr.mxu0 0.0
    %1784 = vmatpush1.msra.mxu0 0.0
    %1785 = vmatprep.subr.mxu0 0.0
    %1786 = vmatpush1.msra.mxu0 0.0
    %1787 = vmatprep.subr.mxu0 0.0
    %1788 = vmatpush1.msra.mxu0 0.0
    %1789 = vmatprep.subr.mxu0 0.0
    %1790 = vmatpush1.msra.mxu0 0.0
    %1791 = vmatprep.subr.mxu0 0.0
    %1792 = vmatpush1.msra.mxu0 0.0
    %1793 = vmatprep.mubr.f32.mxu0 0.0
    %1794 = vmatmul.mubr.f32.gmra.mrb[0].mxu0 %v1727
    %v1795 = vpop.f32.mrb[0].mxu0
    %v1796 = vadd.f32 0.0, %v1795
    %v1797 = vpop.f32.mrb[0].mxu0
    %1798 = vdwg.mxu0
    %1803 = vrot.lane.b32.xlu0 %v1565, 16
    %v1804 = vpop.permute.xlu0 %1803
    %1805 = vrot.lane.b32.xlu0 %v1642, 16
    %v1806 = vpop.permute.xlu0 %1805
    %1807 = vrot.lane.b32.xlu0 %v1719, 16
    %v1808 = vpop.permute.xlu0 %1807
    %1809 = vrot.lane.b32.xlu0 %v1796, 16
    %v1810 = vpop.permute.xlu0 %1809
    %v1815 = vsel %vm429, %v893, %v1804
    %v1816 = vsel %vm429, %v966, %v1806
    %v1817 = vsel %vm429, %v1039, %v1808
    %v1818 = vsel %vm429, %v1112, %v1810
    %1819 = vst.msk [vmem:[#allocation13] sm:$0xff] %vm117, %v1815
    %1820 = vst.msk [vmem:[#allocation13 + $0x8] sm:$0xff] %vm117, %v1816
    %1821 = vst.msk [vmem:[#allocation13 + $0x10] sm:$0xff] %vm117, %v1817
    %1822 = vst.msk [vmem:[#allocation13 + $0x18] sm:$0xff] %vm117, %v1818
    // Predicated region
    $region54: #{tpu_custom_call.1} parent=1 // pred_check
      _
    $region55: #{tpu_custom_call.1} parent=1 // pred_check_branch
      %1824 = sbr.rel (0) target = $region57
    $region56: #{tpu_custom_call.1} parent=1 // pred_region
      %s1826 = ssub.s32 512, 512
      %1827 = vsyncadd [#allocation4], %s1826
      %s1828 = sshll.u32 [#allocation13], 4
      %s1829 = int_to_ptr.vmem [resolvable:$true] %s1828
      %1834 = dma.vmem_to_hbm [thread:$0]  %s1829, 512, %s7, [#allocation4], 128, 128, 8
    $region57: #{tpu_custom_call.1} parent=1 // pred_fallthru
      _
    // Predicated region
    $region58: #{tpu_custom_call.1} parent=1 // pred_check
      _
    $region59: #{tpu_custom_call.1} parent=1 // pred_check_branch
      %1836 = sbr.rel (0) target = $region61
    $region60: #{tpu_custom_call.1} parent=1 // pred_region
      %1837 = dma.done [#allocation4], 512
    $region61: #{tpu_custom_call.1} parent=1 // pred_fallthru
      _
    %1838 = vsyncpa [#allocation3], 1
    %1839 = vsyncpa [#allocation6], 1
    %1840 = vsyncpa [#allocation9], 1
    %1841 = vsyncpa [#allocation12], 1
    %1842 = vsyncpa [#allocation4], 1

</llo_original>
